<compile_context>
chip_gen: v7x
topology: tpu7x:2x2x1
jax: 0.10.0
libtpu: 0.0.40
codegen_flags: <defaults>
</compile_context>

<pallas_src>
import functools

import jax
import jax.numpy as jnp
import numpy as np
from jax.experimental import pallas as pl
from jax.experimental.pallas import tpu as pltpu


# ----------------------------- module "init" params -------------------------
DX = 0.025
DY = 0.025
LB = 0.0          # lower bound of the domain
UB = 2.5          # upper bound of the domain
REGULARIZED = 1.0
PDE_LOSS_PENALTY = 0.0
V_BACKGROUND = 1.5
V_BG_HALF = V_BACKGROUND / 2.0   # self.v_background = v_background / 2.0

# synthetic net sizes (net = sin-embedding -> tanh MLP -> 2 outputs)
EMBED = 32
HIDDEN = 32

# normalized FD offsets (constants for the angle-addition identity)
DXP = 2.0 * DX / (UB - LB)
DYP = 2.0 * DY / (UB - LB)

INV_DX2 = 1.0 / (DX * DX)
INV_DY2 = 1.0 / (DY * DY)

# feature-major point layout: rows 0..8 = x,y,sx,m,m0,u0r,u0i,du_r,du_i,
# row 9 = 1.0 (carries the sin-embedding bias through the MXU matmul),
# rows 10..15 = 0 (pads the contraction dim to a sublane multiple).
NROWS = 16


def _normalize(z):
    return 2.0 * (z - LB) / (UB - LB) - 1.0


# ----------------------------- Pallas kernel --------------------------------
def helmholtz_fd_kernel(
    scal_ref,            # SMEM scalar prefetch (1,): [omega]
    pts_ref,             # VMEM (NROWS, T) feature-major point block
    bmt_ref,             # VMEM (EMBED, NROWS): a*Bm^T in cols 0..2, bias col 9
    trig_ref,            # VMEM (EMBED, 4): [cos(dx'B0), sin(dx'B0), cos(dy'B1), sin(dy'B1)]
    w1t_ref, b1c_ref,    # VMEM (HIDDEN, EMBED), (HIDDEN, 1)
    w2t_ref,             # VMEM (2, HIDDEN)
    b2lap_ref,           # VMEM (2, 1): 2*(1/dx^2 + 1/dy^2) * b2
    out_ref,             # VMEM (1, 8, 128): lane0 = pde partial, lane1 = reg partial
    emb_scr,             # VMEM (EMBED, 4*T) scratch for the 4 neighbour embeddings
):
    omega = scal_ref[0]
    t = pts_ref.shape[1]

    # ---- lane-dense point-wise rows -----------------------------------------
    x  = pts_ref[0:1, :]
    y  = pts_ref[1:2, :]
    sx = pts_ref[2:3, :]
    m  = pts_ref[3:4, :]
    m0 = pts_ref[4:5, :]
    u0 = pts_ref[5:7, :]          # (2, T): [u0_real; u0_imag]
    du = pts_ref[7:9, :]          # (2, T): [du_real; du_imag]

    # ---- embedding pre-activation on the MXU --------------------------------
    # normalize + bias folded into the weights / the ones-row of pts.
    pre = jnp.dot(bmt_ref[...], pts_ref[...],
                  preferred_element_type=jnp.float32)           # (EMBED, T)
    s = jnp.sin(pre)
    c = jnp.cos(pre)

    # ---- 4 neighbour embeddings via angle addition, one trig product each ---
    cdx = trig_ref[:, 0:1]
    sdx = trig_ref[:, 1:2]
    cdy = trig_ref[:, 2:3]
    sdy = trig_ref[:, 3:4]
    scx = s * cdx
    csx = c * sdx
    scy = s * cdy
    csy = c * sdy
    emb_scr[:, 0 * t:1 * t] = scx - csx       # x - dx
    emb_scr[:, 1 * t:2 * t] = scx + csx       # x + dx
    emb_scr[:, 2 * t:3 * t] = scy - csy       # y - dy
    emb_scr[:, 3 * t:4 * t] = scy + csy       # y + dy

    # ---- shared hidden layer for all four neighbours ------------------------
    h = jnp.tanh(
        jnp.dot(w1t_ref[...], emb_scr[...], preferred_element_type=jnp.float32)
        + b1c_ref[...]
    )                                                            # (HIDDEN, 4T)

    # ---- FD Laplacian folded into the output matmul -------------------------
    # lap = W2 @ (ix2*(h_l+h_r) + iy2*(h_t+h_d)) + 2*(ix2+iy2)*b2
    #       - 2*(ix2+iy2)*du
    hw = (INV_DX2 * (h[:, 0 * t:1 * t] + h[:, 1 * t:2 * t])
          + INV_DY2 * (h[:, 2 * t:3 * t] + h[:, 3 * t:4 * t]))  # (HIDDEN, T)
    lap_nb = (jnp.dot(w2t_ref[...], hw, preferred_element_type=jnp.float32)
              + b2lap_ref[...])                                  # (2, T)

    # ---- Helmholtz residual, vectorized over real/imag ----------------------
    om2 = omega * omega
    cdu = om2 * m - 2.0 * (INV_DX2 + INV_DY2)                    # (1, T)
    dm = om2 * (m - m0)                                          # (1, T)
    f = cdu * du + lap_nb + dm * u0                              # (2, T)

    # regloss mask (3.14 kept as in the PyTorch source)
    factor_d = jnp.maximum(
        (V_BG_HALF * 3.14 / omega) ** 2 - (sx - x) ** 2 - (y - 0.025) ** 2, 0.0
    ) * 100000000.0 * omega                                      # (1, T)

    # per-tile partial sums; no carried state -> grid axis can be "parallel"
    pde_part = jnp.sum(f * f)
    reg_part = jnp.sum(factor_d * (du * du))

    lane = jax.lax.broadcasted_iota(jnp.int32, out_ref.shape, 2)
    out_ref[...] = (jnp.where(lane == 0, pde_part, 0.0)
                    + jnp.where(lane == 1, reg_part, 0.0))


# ----------------------------- packing helpers -------------------------------
def pack_params(params):
    """One-time repack of the net params into kernel-ready tensors."""
    Bm, w1, b1, w2, b2 = params
    embed = Bm.shape[1]
    a = 2.0 / (UB - LB)
    cc = -2.0 * LB / (UB - LB) - 1.0
    bmt = jnp.zeros((embed, NROWS), jnp.float32)
    bmt = bmt.at[:, 0:3].set((a * Bm).T.astype(jnp.float32))
    bmt = bmt.at[:, 9].set((cc * jnp.sum(Bm, axis=0)).astype(jnp.float32))
    trig = jnp.stack(
        [jnp.cos(DXP * Bm[0, :]), jnp.sin(DXP * Bm[0, :]),
         jnp.cos(DYP * Bm[1, :]), jnp.sin(DYP * Bm[1, :])], axis=1
    ).astype(jnp.float32)                                        # (EMBED, 4)
    w1t = w1.T.astype(jnp.float32)                               # (HIDDEN, EMBED)
    b1c = jnp.reshape(b1, (-1, 1)).astype(jnp.float32)           # (HIDDEN, 1)
    w2t = w2.T.astype(jnp.float32)                               # (2, HIDDEN)
    b2lap = (2.0 * (INV_DX2 + INV_DY2)
             * jnp.reshape(b2, (-1, 1)).astype(jnp.float32))     # (2, 1)
    return bmt, trig, w1t, b1c, w2t, b2lap


def pack_points(x, y, sx, m_train, m0_train, u0_real, u0_imag, du_pred_out):
    """Feature-major (NROWS, N) collocation slab (build once per training run)."""
    n = x.shape[0]
    rows = jnp.concatenate(
        [x, y, sx, m_train, m0_train, u0_real, u0_imag,
         du_pred_out[:, 0:1], du_pred_out[:, 1:2],
         jnp.ones((n, 1), jnp.float32),
         jnp.zeros((n, NROWS - 10), jnp.float32)], axis=1)
    return rows.T.astype(jnp.float32)                            # (NROWS, N)


# ----------------------------- tiling / VMEM policy --------------------------
def _vmem_budget_bytes():
    try:
        cap = pltpu.get_tpu_info().vmem_capacity_bytes   # 64 MiB v7x, 128 MiB v5e/v6e
    except Exception:
        cap = 64 * 1024 * 1024
    return int(min(cap // 2, 64 * 1024 * 1024))


def _pick_tile(n, budget):
    # ~3 KB of live f32 intermediates per point (emb / h at 32 x 4T dominate)
    cap_pts = min(8192, max(128, (budget // 3072) // 128 * 128))
    if n <= cap_pts:
        return n
    for cand in range(cap_pts, 127, -128):
        if n % cand == 0:
            return cand
    return 128


# ----------------------------- pallas_call core -------------------------------
def _helmholtz_fd_call(pts, omega, packed, tile, vmem_limit):
    bmt, trig, w1t, b1c, w2t, b2lap = packed
    nrows, n = pts.shape
    embed = bmt.shape[0]
    hidden = w1t.shape[0]
    grid_steps = n // tile
    const = lambda i, s: (0, 0)

    scal = jnp.reshape(jnp.asarray(omega, jnp.float32), (1,))

    partials = pl.pallas_call(
        helmholtz_fd_kernel,
        out_shape=jax.ShapeDtypeStruct((grid_steps, 8, 128), jnp.float32),
        grid_spec=pltpu.PrefetchScalarGridSpec(
            num_scalar_prefetch=1,
            grid=(grid_steps,),
            in_specs=[
                pl.BlockSpec((nrows, tile), lambda i, s: (0, i)),   # points
                pl.BlockSpec((embed, nrows), const),                # scaled Bm^T
                pl.BlockSpec((embed, 4), const),                    # trig consts
                pl.BlockSpec((hidden, embed), const),               # w1^T
                pl.BlockSpec((hidden, 1), const),                   # b1
                pl.BlockSpec((2, hidden), const),                   # w2^T
                pl.BlockSpec((2, 1), const),                        # lap-scaled b2
            ],
            out_specs=pl.BlockSpec((1, 8, 128), lambda i, s: (i, 0, 0)),
            scratch_shapes=[pltpu.VMEM((embed, 4 * tile), jnp.float32)],
        ),
        compiler_params=pltpu.CompilerParams(
            dimension_semantics=("parallel",),      # both TCs on v7x, neutral elsewhere
            vmem_limit_bytes=vmem_limit),
    )(scal, pts, bmt, trig, w1t, b1c, w2t, b2lap)

    inv_2n = 1.0 / (2.0 * n)
    loss_pde = jnp.sum(partials[:, 0, 0]) * inv_2n
    loss_reg = jnp.sum(partials[:, 0, 1]) * inv_2n
    total = loss_pde + REGULARIZED * loss_reg + PDE_LOSS_PENALTY * 0.0
    return total, loss_pde, loss_reg


# ----------------------------- public wrappers --------------------------------
@functools.partial(jax.jit, static_argnames=("tile",))
def helmholtz_loss_pde_fd_packed(pts, omega, packed_params, tile=None):
    """Pre-packed entry point (feature-major pts, packed params)."""
    n = pts.shape[1]
    budget = _vmem_budget_bytes()
    if tile is None:
        tile = _pick_tile(n, budget)
    return _helmholtz_fd_call(pts, omega, packed_params, tile, budget)


@functools.partial(jax.jit, static_argnames=("tile",))
def helmholtz_loss_pde_fd(x, y, sx, omega, m_train, m0_train,
                          u0_real, u0_imag, du_pred_out, params, tile=None):
    """Column-vector (module-signature) entry point.  Returns
    (total_loss, loss_pde, loss_reg) as f32 scalars."""
    n = x.shape[0]
    if n % 128 != 0:
        raise ValueError("number of collocation points must be a multiple of 128")
    budget = _vmem_budget_bytes()
    if tile is None:
        tile = _pick_tile(n, budget)
    if n % tile != 0 or tile % 128 != 0:
        raise ValueError("tile must divide N and be a multiple of 128")
    pts = pack_points(x, y, sx, m_train, m0_train, u0_real, u0_imag, du_pred_out)
    packed = pack_params(params)
    return _helmholtz_fd_call(pts, omega, packed, tile, budget)


# ----------------------------- pure-JAX reference ----------------------------
_HI = jax.lax.Precision.HIGHEST


def _query_ref(xs, ys, sxs, params):
    Bm, w1, b1, w2, b2 = params
    xn, yn, sn = _normalize(xs), _normalize(ys), _normalize(sxs)
    pre = xn * Bm[0:1, :] + yn * Bm[1:2, :] + sn * Bm[2:3, :]
    emb = jnp.sin(pre)
    h = jnp.tanh(jnp.dot(emb, w1, precision=_HI) + b1)
    return jnp.dot(h, w2, precision=_HI) + b2


def helmholtz_ref(x, y, sx, omega, m, m0, u0r, u0i, du, params):
    ul = _query_ref(x - DX, y, sx, params)
    ur = _query_ref(x + DX, y, sx, params)
    ut = _query_ref(x, y - DY, sx, params)
    ud = _query_ref(x, y + DY, sx, params)

    def lap(a, b, c, d, u):
        return (a + b - 2.0 * u) / DX ** 2 + (c + d - 2.0 * u) / DY ** 2

    du_r, du_i = du[:, 0:1], du[:, 1:2]
    lap_r = lap(ul[:, 0:1], ur[:, 0:1], ut[:, 0:1], ud[:, 0:1], du_r)
    lap_i = lap(ul[:, 1:2], ur[:, 1:2], ut[:, 1:2], ud[:, 1:2], du_i)
    om2 = omega * omega
    f_r = om2 * m * du_r + lap_r + om2 * (m - m0) * u0r
    f_i = om2 * m * du_i + lap_i + om2 * (m - m0) * u0i
    factor_d = jnp.maximum(
        (V_BG_HALF * 3.14 / omega) ** 2 - (sx - x) ** 2 - (y - 0.025) ** 2, 0.0
    ) * 1e8 * omega
    denom = x.shape[0] * 2.0
    loss_reg = (jnp.sum(factor_d * du_r ** 2) + jnp.sum(factor_d * du_i ** 2)) / denom
    loss_pde = (jnp.sum(f_r ** 2) + jnp.sum(f_i ** 2)) / denom
    return loss_pde + REGULARIZED * loss_reg, loss_pde, loss_reg


# ----------------------------- main ------------------------------------------
if __name__ == "__main__":
    root = jax.random.PRNGKey(0)
    kparam, kdata1, kdata2 = jax.random.split(root, 3)
    kB, k1, k2 = jax.random.split(kparam, 3)

    # deterministic synthetic net params
    Bm = jax.random.normal(kB, (3, EMBED), jnp.float32)
    w1 = jax.random.normal(k1, (EMBED, HIDDEN), jnp.float32) / np.sqrt(EMBED)
    b1 = jnp.zeros((1, HIDDEN), jnp.float32)
    w2 = jax.random.normal(k2, (HIDDEN, 2), jnp.float32) / np.sqrt(HIDDEN)
    b2 = jnp.zeros((1, 2), jnp.float32)
    params = (Bm, w1, b1, w2, b2)

    omega = jnp.float32(2.0 * np.pi * 5.0)

    def make_data(n, key):
        kk = jax.random.split(key, 6)
        x = jax.random.uniform(kk[0], (n, 1), jnp.float32, LB, UB)
        y = jax.random.uniform(kk[1], (n, 1), jnp.float32, LB, UB)
        sx = jax.random.uniform(kk[2], (n, 1), jnp.float32, LB, UB)
        vel = jax.random.uniform(kk[3], (n, 1), jnp.float32, 1.5, 3.0)
        m_train = 1.0 / (vel * vel)
        m0_train = jnp.full((n, 1), 1.0 / (1.5 * 1.5), jnp.float32)
        u0_real = 0.1 * jax.random.normal(kk[4], (n, 1), jnp.float32)
        u0_imag = 0.1 * jax.random.normal(kk[5], (n, 1), jnp.float32)
        du = _query_ref(x, y, sx, params)                      # (n, 2)
        return x, y, sx, m_train, m0_train, u0_real, u0_imag, du

    # --- test 1: N=256, tile=128 -> 2-step grid (multi-tile partial-sum path)
    d1 = make_data(256, kdata1)
    out1 = helmholtz_loss_pde_fd(*d1[:3], omega, *d1[3:], params, tile=128)
    jax.block_until_ready(out1)
    ref1 = helmholtz_ref(*d1[:3], omega, *d1[3:], params)
    for a, b in zip(out1, ref1):
        np.testing.assert_allclose(np.asarray(a), np.asarray(b), rtol=2e-2)

    # --- test 2: N=1024 through the pre-packed entry point (8-step grid)
    d2 = make_data(1024, kdata2)
    pts2 = pack_points(*d2)
    packed = pack_params(params)
    out2 = helmholtz_loss_pde_fd_packed(pts2, omega, packed, tile=128)
    jax.block_until_ready(out2)
    ref2 = helmholtz_ref(*d2[:3], omega, *d2[3:], params)
    for a, b in zip(out2, ref2):
        np.testing.assert_allclose(np.asarray(a), np.asarray(b), rtol=2e-2)

    print("KERNEL_OK")
</pallas_src>

<mosaic_0001>
module attributes {stable_mosaic.version = 11 : i64} {
  func.func @helmholtz_fd_kernel(%arg0: i32, %arg1: memref<1xf32, #tpu.memory_space<smem>>, %arg2: memref<16x128xf32, #tpu.memory_space<vmem>>, %arg3: memref<32x16xf32, #tpu.memory_space<vmem>>, %arg4: memref<32x4xf32, #tpu.memory_space<vmem>>, %arg5: memref<32x32xf32, #tpu.memory_space<vmem>>, %arg6: memref<32x1xf32, #tpu.memory_space<vmem>>, %arg7: memref<2x32xf32, #tpu.memory_space<vmem>>, %arg8: memref<2x1xf32, #tpu.memory_space<vmem>>, %arg9: memref<1x8x128xf32, #tpu.memory_space<vmem>>, %arg10: memref<32x512xf32, #tpu.memory_space<vmem>>) attributes {dimension_semantics = [#tpu.dimension_semantics<parallel>], iteration_bounds = array<i64: 2>, scalar_prefetch = 1 : i64, scratch_operands = 1 : i64, tpu.core_type = #tpu.core_type<tc>, window_params = [{transform_indices = @transform_0, window_bounds = array<i64: 16, 128>}, {pipeline_mode = #tpu.pipeline_mode<synchronous>, transform_indices = @transform_1, window_bounds = array<i64: 32, 16>}, {pipeline_mode = #tpu.pipeline_mode<synchronous>, transform_indices = @transform_2, window_bounds = array<i64: 32, 4>}, {pipeline_mode = #tpu.pipeline_mode<synchronous>, transform_indices = @transform_3, window_bounds = array<i64: 32, 32>}, {pipeline_mode = #tpu.pipeline_mode<synchronous>, transform_indices = @transform_4, window_bounds = array<i64: 32, 1>}, {pipeline_mode = #tpu.pipeline_mode<synchronous>, transform_indices = @transform_5, window_bounds = array<i64: 2, 32>}, {pipeline_mode = #tpu.pipeline_mode<synchronous>, transform_indices = @transform_6, window_bounds = array<i64: 2, 1>}, {transform_indices = @transform_7, window_bounds = array<i64: 1, 8, 128>}]} {
    %c0 = arith.constant 0 : index
    %0 = memref.load %arg1[%c0] : memref<1xf32, #tpu.memory_space<smem>>
    %c0_0 = arith.constant 0 : index
    %c0_1 = arith.constant 0 : index
    %1 = vector.load %arg2[%c0_0, %c0_1] : memref<16x128xf32, #tpu.memory_space<vmem>>, vector<1x128xf32>
    %c1 = arith.constant 1 : index
    %c0_2 = arith.constant 0 : index
    %2 = vector.load %arg2[%c1, %c0_2] : memref<16x128xf32, #tpu.memory_space<vmem>>, vector<1x128xf32>
    %c2 = arith.constant 2 : index
    %c0_3 = arith.constant 0 : index
    %3 = vector.load %arg2[%c2, %c0_3] : memref<16x128xf32, #tpu.memory_space<vmem>>, vector<1x128xf32>
    %c3 = arith.constant 3 : index
    %c0_4 = arith.constant 0 : index
    %4 = vector.load %arg2[%c3, %c0_4] : memref<16x128xf32, #tpu.memory_space<vmem>>, vector<1x128xf32>
    %c4 = arith.constant 4 : index
    %c0_5 = arith.constant 0 : index
    %5 = vector.load %arg2[%c4, %c0_5] : memref<16x128xf32, #tpu.memory_space<vmem>>, vector<1x128xf32>
    %c5 = arith.constant 5 : index
    %c0_6 = arith.constant 0 : index
    %6 = vector.load %arg2[%c5, %c0_6] : memref<16x128xf32, #tpu.memory_space<vmem>>, vector<2x128xf32>
    %c7 = arith.constant 7 : index
    %c0_7 = arith.constant 0 : index
    %7 = vector.load %arg2[%c7, %c0_7] : memref<16x128xf32, #tpu.memory_space<vmem>>, vector<2x128xf32>
    %c0_8 = arith.constant 0 : index
    %c0_9 = arith.constant 0 : index
    %8 = vector.load %arg3[%c0_8, %c0_9] : memref<32x16xf32, #tpu.memory_space<vmem>>, vector<32x16xf32>
    %c0_10 = arith.constant 0 : index
    %c0_11 = arith.constant 0 : index
    %9 = vector.load %arg2[%c0_10, %c0_11] : memref<16x128xf32, #tpu.memory_space<vmem>>, vector<16x128xf32>
    %cst = arith.constant dense<0.000000e+00> : vector<32x128xf32>
    %10 = tpu.matmul %8, %9, %cst {dimension_numbers = #tpu.dot_dimension_numbers<[1], [0], [0], [1], [0, 0, 1, 1], [], []>} : vector<32x16xf32>, vector<16x128xf32>, vector<32x128xf32> -> vector<32x128xf32>
    %11 = math.sin %10 : vector<32x128xf32>
    %12 = math.cos %10 : vector<32x128xf32>
    %c0_12 = arith.constant 0 : index
    %c0_13 = arith.constant 0 : index
    %13 = vector.load %arg4[%c0_12, %c0_13] : memref<32x4xf32, #tpu.memory_space<vmem>>, vector<32x1xf32>
    %c0_14 = arith.constant 0 : index
    %c1_15 = arith.constant 1 : index
    %14 = vector.load %arg4[%c0_14, %c1_15] : memref<32x4xf32, #tpu.memory_space<vmem>>, vector<32x1xf32>
    %c0_16 = arith.constant 0 : index
    %c2_17 = arith.constant 2 : index
    %15 = vector.load %arg4[%c0_16, %c2_17] : memref<32x4xf32, #tpu.memory_space<vmem>>, vector<32x1xf32>
    %c0_18 = arith.constant 0 : index
    %c3_19 = arith.constant 3 : index
    %16 = vector.load %arg4[%c0_18, %c3_19] : memref<32x4xf32, #tpu.memory_space<vmem>>, vector<32x1xf32>
    %17 = vector.broadcast %13 : vector<32x1xf32> to vector<32x128xf32>
    %18 = arith.mulf %11, %17 : vector<32x128xf32>
    %19 = vector.broadcast %14 : vector<32x1xf32> to vector<32x128xf32>
    %20 = arith.mulf %12, %19 : vector<32x128xf32>
    %21 = vector.broadcast %15 : vector<32x1xf32> to vector<32x128xf32>
    %22 = arith.mulf %11, %21 : vector<32x128xf32>
    %23 = vector.broadcast %16 : vector<32x1xf32> to vector<32x128xf32>
    %24 = arith.mulf %12, %23 : vector<32x128xf32>
    %25 = arith.subf %18, %20 : vector<32x128xf32>
    %c0_20 = arith.constant 0 : index
    %c0_21 = arith.constant 0 : index
    %26 = vector.load %arg10[%c0_20, %c0_21] : memref<32x512xf32, #tpu.memory_space<vmem>>, vector<32x128xf32>
    tpu.vector_store %arg10[%c0_20, %c0_21], %25 {strides = array<i32>} : memref<32x512xf32, #tpu.memory_space<vmem>>, vector<32x128xf32>,
    %27 = arith.addf %18, %20 : vector<32x128xf32>
    %c0_22 = arith.constant 0 : index
    %c128 = arith.constant 128 : index
    %28 = vector.load %arg10[%c0_22, %c128] : memref<32x512xf32, #tpu.memory_space<vmem>>, vector<32x128xf32>
    tpu.vector_store %arg10[%c0_22, %c128], %27 {strides = array<i32>} : memref<32x512xf32, #tpu.memory_space<vmem>>, vector<32x128xf32>,
    %29 = arith.subf %22, %24 : vector<32x128xf32>
    %c0_23 = arith.constant 0 : index
    %c256 = arith.constant 256 : index
    %30 = vector.load %arg10[%c0_23, %c256] : memref<32x512xf32, #tpu.memory_space<vmem>>, vector<32x128xf32>
    tpu.vector_store %arg10[%c0_23, %c256], %29 {strides = array<i32>} : memref<32x512xf32, #tpu.memory_space<vmem>>, vector<32x128xf32>,
    %31 = arith.addf %22, %24 : vector<32x128xf32>
    %c0_24 = arith.constant 0 : index
    %c384 = arith.constant 384 : index
    %32 = vector.load %arg10[%c0_24, %c384] : memref<32x512xf32, #tpu.memory_space<vmem>>, vector<32x128xf32>
    tpu.vector_store %arg10[%c0_24, %c384], %31 {strides = array<i32>} : memref<32x512xf32, #tpu.memory_space<vmem>>, vector<32x128xf32>,
    %c0_25 = arith.constant 0 : index
    %c0_26 = arith.constant 0 : index
    %33 = vector.load %arg5[%c0_25, %c0_26] : memref<32x32xf32, #tpu.memory_space<vmem>>, vector<32x32xf32>
    %c0_27 = arith.constant 0 : index
    %c0_28 = arith.constant 0 : index
    %34 = vector.load %arg10[%c0_27, %c0_28] : memref<32x512xf32, #tpu.memory_space<vmem>>, vector<32x512xf32>
    %cst_29 = arith.constant dense<0.000000e+00> : vector<32x512xf32>
    %35 = tpu.matmul %33, %34, %cst_29 {dimension_numbers = #tpu.dot_dimension_numbers<[1], [0], [0], [1], [0, 0, 1, 1], [], []>} : vector<32x32xf32>, vector<32x512xf32>, vector<32x512xf32> -> vector<32x512xf32>
    %c0_30 = arith.constant 0 : index
    %c0_31 = arith.constant 0 : index
    %36 = vector.load %arg6[%c0_30, %c0_31] : memref<32x1xf32, #tpu.memory_space<vmem>>, vector<32x1xf32>
    %37 = vector.broadcast %36 : vector<32x1xf32> to vector<32x512xf32>
    %38 = arith.addf %35, %37 : vector<32x512xf32>
    %39 = math.tanh %38 : vector<32x512xf32>
    %40 = vector.extract_strided_slice %39 {offsets = [0, 0], sizes = [32, 128], strides = [1, 1]} : vector<32x512xf32> to vector<32x128xf32>
    %41 = vector.extract_strided_slice %39 {offsets = [0, 128], sizes = [32, 128], strides = [1, 1]} : vector<32x512xf32> to vector<32x128xf32>
    %42 = arith.addf %40, %41 : vector<32x128xf32>
    %cst_32 = arith.constant 1.600000e+03 : f32
    %43 = vector.broadcast %cst_32 : f32 to vector<32x128xf32>
    %44 = arith.mulf %43, %42 : vector<32x128xf32>
    %45 = vector.extract_strided_slice %39 {offsets = [0, 256], sizes = [32, 128], strides = [1, 1]} : vector<32x512xf32> to vector<32x128xf32>
    %46 = vector.extract_strided_slice %39 {offsets = [0, 384], sizes = [32, 128], strides = [1, 1]} : vector<32x512xf32> to vector<32x128xf32>
    %47 = arith.addf %45, %46 : vector<32x128xf32>
    %cst_33 = arith.constant 1.600000e+03 : f32
    %48 = vector.broadcast %cst_33 : f32 to vector<32x128xf32>
    %49 = arith.mulf %48, %47 : vector<32x128xf32>
    %50 = arith.addf %44, %49 : vector<32x128xf32>
    %c0_34 = arith.constant 0 : index
    %c0_35 = arith.constant 0 : index
    %51 = vector.load %arg7[%c0_34, %c0_35] : memref<2x32xf32, #tpu.memory_space<vmem>>, vector<2x32xf32>
    %cst_36 = arith.constant dense<0.000000e+00> : vector<2x128xf32>
    %52 = tpu.matmul %51, %50, %cst_36 {dimension_numbers = #tpu.dot_dimension_numbers<[1], [0], [0], [1], [0, 0, 1, 1], [], []>} : vector<2x32xf32>, vector<32x128xf32>, vector<2x128xf32> -> vector<2x128xf32>
    %c0_37 = arith.constant 0 : index
    %c0_38 = arith.constant 0 : index
    %53 = vector.load %arg8[%c0_37, %c0_38] : memref<2x1xf32, #tpu.memory_space<vmem>>, vector<2x1xf32>
    %54 = vector.broadcast %53 : vector<2x1xf32> to vector<2x128xf32>
    %55 = arith.addf %52, %54 : vector<2x128xf32>
    %56 = arith.mulf %0, %0 : f32
    %57 = vector.broadcast %56 : f32 to vector<1x128xf32>
    %58 = arith.mulf %57, %4 : vector<1x128xf32>
    %cst_39 = arith.constant 6.400000e+03 : f32
    %59 = vector.broadcast %cst_39 : f32 to vector<1x128xf32>
    %60 = arith.subf %58, %59 : vector<1x128xf32>
    %61 = arith.subf %4, %5 : vector<1x128xf32>
    %62 = vector.broadcast %56 : f32 to vector<1x128xf32>
    %63 = arith.mulf %62, %61 : vector<1x128xf32>
    %64 = vector.broadcast %60 : vector<1x128xf32> to vector<2x128xf32>
    %65 = arith.mulf %64, %7 : vector<2x128xf32>
    %66 = arith.addf %65, %55 : vector<2x128xf32>
    %67 = vector.broadcast %63 : vector<1x128xf32> to vector<2x128xf32>
    %68 = arith.mulf %67, %6 : vector<2x128xf32>
    %69 = arith.addf %66, %68 : vector<2x128xf32>
    %cst_40 = arith.constant 2.355000e+00 : f32
    %70 = arith.divf %cst_40, %0 : f32
    %71 = arith.mulf %70, %70 : f32
    %72 = arith.subf %3, %1 : vector<1x128xf32>
    %73 = arith.mulf %72, %72 : vector<1x128xf32>
    %74 = vector.broadcast %71 : f32 to vector<1x128xf32>
    %75 = arith.subf %74, %73 : vector<1x128xf32>
    %cst_41 = arith.constant 2.500000e-02 : f32
    %76 = vector.broadcast %cst_41 : f32 to vector<1x128xf32>
    %77 = arith.subf %2, %76 : vector<1x128xf32>
    %78 = arith.mulf %77, %77 : vector<1x128xf32>
    %79 = arith.subf %75, %78 : vector<1x128xf32>
    %cst_42 = arith.constant 0.000000e+00 : f32
    %80 = vector.broadcast %cst_42 : f32 to vector<1x128xf32>
    %81 = arith.maximumf %79, %80 : vector<1x128xf32>
    %cst_43 = arith.constant 1.000000e+08 : f32
    %82 = vector.broadcast %cst_43 : f32 to vector<1x128xf32>
    %83 = arith.mulf %81, %82 : vector<1x128xf32>
    %84 = vector.broadcast %0 : f32 to vector<1x128xf32>
    %85 = arith.mulf %83, %84 : vector<1x128xf32>
    %86 = arith.mulf %69, %69 : vector<2x128xf32>
    %87 = vector.shape_cast %86 : vector<2x128xf32> to vector<1x2x128xf32>
    %cst_44 = arith.constant dense<0.000000e+00> : vector<1xf32>
    %88 = vector.multi_reduction <add>, %87, %cst_44 [1, 2] : vector<1x2x128xf32> to vector<1xf32>
    %89 = vector.shape_cast %88 : vector<1xf32> to vector<1x1x1xf32>
    %90 = vector.extract %89[0, 0, 0] : f32 from vector<1x1x1xf32>
    %91 = arith.mulf %7, %7 : vector<2x128xf32>
    %92 = vector.broadcast %85 : vector<1x128xf32> to vector<2x128xf32>
    %93 = arith.mulf %92, %91 : vector<2x128xf32>
    %94 = vector.shape_cast %93 : vector<2x128xf32> to vector<1x2x128xf32>
    %cst_45 = arith.constant dense<0.000000e+00> : vector<1xf32>
    %95 = vector.multi_reduction <add>, %94, %cst_45 [1, 2] : vector<1x2x128xf32> to vector<1xf32>
    %96 = vector.shape_cast %95 : vector<1xf32> to vector<1x1x1xf32>
    %97 = vector.extract %96[0, 0, 0] : f32 from vector<1x1x1xf32>
    %98 = tpu.iota {dimensions = array<i32: 2>} : vector<1x8x128xi32>
    %c0_i32 = arith.constant 0 : i32
    %99 = vector.broadcast %c0_i32 : i32 to vector<1x8x128xi32>
    %100 = arith.cmpi eq, %98, %99 : vector<1x8x128xi32>
    %cst_46 = arith.constant 0.000000e+00 : f32
    %101 = vector.broadcast %90 : f32 to vector<1x8x128xf32>
    %102 = vector.broadcast %cst_46 : f32 to vector<1x8x128xf32>
    %103 = arith.select %100, %101, %102 : vector<1x8x128xi1>, vector<1x8x128xf32>
    %c1_i32 = arith.constant 1 : i32
    %104 = vector.broadcast %c1_i32 : i32 to vector<1x8x128xi32>
    %105 = arith.cmpi eq, %98, %104 : vector<1x8x128xi32>
    %cst_47 = arith.constant 0.000000e+00 : f32
    %106 = vector.broadcast %97 : f32 to vector<1x8x128xf32>
    %107 = vector.broadcast %cst_47 : f32 to vector<1x8x128xf32>
    %108 = arith.select %105, %106, %107 : vector<1x8x128xi1>, vector<1x8x128xf32>
    %109 = arith.addf %103, %108 : vector<1x8x128xf32>
    %c0_48 = arith.constant 0 : index
    %c0_49 = arith.constant 0 : index
    %c0_50 = arith.constant 0 : index
    %110 = vector.load %arg9[%c0_48, %c0_49, %c0_50] : memref<1x8x128xf32, #tpu.memory_space<vmem>>, vector<1x8x128xf32>
    tpu.vector_store %arg9[%c0_48, %c0_49, %c0_50], %109 {strides = array<i32>} : memref<1x8x128xf32, #tpu.memory_space<vmem>>, vector<1x8x128xf32>,
    return
  }
  func.func @transform_0(%arg0: i32, %arg1: memref<1xf32, #tpu.memory_space<smem>>) -> (i32, i32) {
    %c0_i32 = arith.constant 0 : i32
    %c0_i32_0 = arith.constant 0 : i32
    return %c0_i32, %arg0 : i32, i32
  }
  func.func @transform_1(%arg0: i32, %arg1: memref<1xf32, #tpu.memory_space<smem>>) -> (i32, i32) {
    %c0_i32 = arith.constant 0 : i32
    %c0_i32_0 = arith.constant 0 : i32
    %c0_i32_1 = arith.constant 0 : i32
    return %c0_i32, %c0_i32_0 : i32, i32
  }
  func.func @transform_2(%arg0: i32, %arg1: memref<1xf32, #tpu.memory_space<smem>>) -> (i32, i32) {
    %c0_i32 = arith.constant 0 : i32
    %c0_i32_0 = arith.constant 0 : i32
    %c0_i32_1 = arith.constant 0 : i32
    return %c0_i32, %c0_i32_0 : i32, i32
  }
  func.func @transform_3(%arg0: i32, %arg1: memref<1xf32, #tpu.memory_space<smem>>) -> (i32, i32) {
    %c0_i32 = arith.constant 0 : i32
    %c0_i32_0 = arith.constant 0 : i32
    %c0_i32_1 = arith.constant 0 : i32
    return %c0_i32, %c0_i32_0 : i32, i32
  }
  func.func @transform_4(%arg0: i32, %arg1: memref<1xf32, #tpu.memory_space<smem>>) -> (i32, i32) {
    %c0_i32 = arith.constant 0 : i32
    %c0_i32_0 = arith.constant 0 : i32
    %c0_i32_1 = arith.constant 0 : i32
    return %c0_i32, %c0_i32_0 : i32, i32
  }
  func.func @transform_5(%arg0: i32, %arg1: memref<1xf32, #tpu.memory_space<smem>>) -> (i32, i32) {
    %c0_i32 = arith.constant 0 : i32
    %c0_i32_0 = arith.constant 0 : i32
    %c0_i32_1 = arith.constant 0 : i32
    return %c0_i32, %c0_i32_0 : i32, i32
  }
  func.func @transform_6(%arg0: i32, %arg1: memref<1xf32, #tpu.memory_space<smem>>) -> (i32, i32) {
    %c0_i32 = arith.constant 0 : i32
    %c0_i32_0 = arith.constant 0 : i32
    %c0_i32_1 = arith.constant 0 : i32
    return %c0_i32, %c0_i32_0 : i32, i32
  }
  func.func @transform_7(%arg0: i32, %arg1: memref<1xf32, #tpu.memory_space<smem>>) -> (i32, i32, i32) {
    %c0_i32 = arith.constant 0 : i32
    %c0_i32_0 = arith.constant 0 : i32
    %c0_i32_1 = arith.constant 0 : i32
    return %arg0, %c0_i32, %c0_i32_0 : i32, i32, i32
  }
}

</mosaic_0001>

<llo_original>
// kernel: helmholtz_loss_pde_fd.1
$region0: #{helmholtz_loss_pde_fd.1}
  #allocation0 [shape = 'u32[]', space=smem, size = 0x4, offset = 0x4, fixed_abs, tag = 'smem constant byte address 0x4 - core index']
  #allocation1 [shape = 'u32[144,128]{1,0:T(1,128)}', space=vmem, size = 0x12000, scoped, tag = 'internal scratch']
  #allocation2 [shape = 'f32[32,512]{1,0:T(8,128)}', space=vmem, size = 0x10000, scoped, tag = 'scratch operand']
  #allocation3 [shape = 's32[1]{0}', space=sflag, size = 0x4, scoped, tag = 'scoped memory for helmholtz_loss_pde_fd.1']
  #allocation4 [shape = 'f32[1]{0:T(128)S(6)}', space=smem, size = 0x200, scoped, tag = 'prefetched SMEM operand 0']
  %s0 = inlined_call_operand.<no memory space> [shape: f32[1], index: 0, kind: input, shape index: {}]
  %s1 = inlined_call_operand.vmem [shape: f32[16,256], index: 1, kind: input, shape index: {}]
  %s2 = inlined_call_operand.vmem [shape: f32[32,16], index: 2, kind: input, shape index: {}]
  %s3 = inlined_call_operand.vmem [shape: f32[32,4], index: 3, kind: input, shape index: {}]
  %s4 = inlined_call_operand.vmem [shape: f32[32,32], index: 4, kind: input, shape index: {}]
  %s5 = inlined_call_operand.vmem [shape: f32[32,1], index: 5, kind: input, shape index: {}]
  %s6 = inlined_call_operand.vmem [shape: f32[2,32], index: 6, kind: input, shape index: {}]
  %s7 = inlined_call_operand.vmem [shape: f32[2,1], index: 7, kind: input, shape index: {}]
  %s8 = inlined_call_operand.vmem [shape: f32[2,8,128], index: 8, kind: output, shape index: {}]
  %s9 = sld [smem:[#allocation0]]
  $region99: #{helmholtz_loss_pde_fd.1} parent=0
    _
  %s11 = ssub.s32 1, %s9
  %s12 = scalar_select 0, %s11, %s9
  %13 = sst [smem:[#allocation4]] %s0
  $region1: #{helmholtz_loss_pde_fd.1} parent=0
    #allocation5 [shape = 'u8[16384]{0}', space=vmem, size = 0x4000, scoped, tag = 'input window, operand 1']
    loop: start=0, step=1, limit=4
    $region2: #{helmholtz_loss_pde_fd.1} parent=1 // loop_pre_header
      _
    $region3: #{helmholtz_loss_pde_fd.1} parent=1 // loop_header
      %s15 = sphi 0, %s19
      %p16 = scmp.ge.s32.totalorder %s15, 4
      %s25 = sphi 0, %s27
      %s28 = sphi 0, %s25
      %s29 = sphi 0, %s28
      %s45 = sphi 0, %s29
      %s49 = sphi 0, %s49
      %s51 = sphi 0, %s49
      %s52 = sphi 0, %s51
      %s66 = sphi 0, %s52
      %s70 = sphi 0, %s70
      %s72 = sphi 0, %s70
      %s73 = sphi 0, %s72
      %s87 = sphi 0, %s73
      %s91 = sphi 0, %s91
      %s93 = sphi 0, %s91
      %s94 = sphi 0, %s93
      %s108 = sphi 0, %s94
      %s112 = sphi 0, %s112
      %s114 = sphi 0, %s112
      %s115 = sphi 0, %s114
      %s129 = sphi 0, %s115
      %s133 = sphi 0, %s133
      %s135 = sphi 0, %s133
      %s136 = sphi 0, %s135
      %s150 = sphi 0, %s136
      %s154 = sphi 0, %s154
      %s156 = sphi 0, %s154
      %s157 = sphi 0, %s156
      %s171 = sphi 0, %s157
      %s177 = sphi 0, %s179
      %s180 = sphi 0, %s177
      %s181 = sphi 0, %s180
      %s197 = sphi 0, %s181
    $region4: #{helmholtz_loss_pde_fd.1} parent=1 // loop_header_branch
      %18 = sbr.rel (%p16) target = $region8
    $region5: #{helmholtz_loss_pde_fd.1} parent=1 // loop_body
      %s20 = ssub.s32 %s15, 1
      %s21 = ssub.s32 %s15, 2
      %s22 = sadd.s32 %s15, 1
      %s23 = ssub.s32 %s15, %s22
      %p24 = scmp.eq.s32.totalorder %s23, 0
      %s26 = sadd.s32 %s25, 1
      %s27 = scalar_select %p24, %s25, %s26
      %p30 = pneg %p24
      %p31 = scmp.eq.s32.totalorder %s15, 1
      %p32 = por %p30, %p31
      %p33 = scmp.ne.s32.totalorder %s25, %s28
      %p34 = scmp.eq.s32.totalorder %s15, 0
      %p35 = por %p33, %p34
      %p36 = scmp.ne.s32.totalorder %s25, %s28
      %p37 = scmp.eq.s32.totalorder %s20, 1
      %p38 = por %p36, %p37
      %p39 = scmp.ne.s32.totalorder %s28, %s29
      %p40 = scmp.eq.s32.totalorder %s20, 0
      %p41 = por %p39, %p40
      %p42 = scmp.ne.s32.totalorder %s28, %s29
      %p43 = scmp.eq.s32.totalorder %s21, 1
      %p44 = por %p42, %p43
      %p46 = scmp.ne.s32.totalorder %s29, %s45
      %p47 = scmp.eq.s32.totalorder %s21, 0
      %p48 = por %p46, %p47
      %s50 = sadd.s32 %s49, 1
      %p53 = scmp.eq.s32.totalorder %s15, 1
      %p54 = scmp.ne.s32.totalorder %s49, %s51
      %p55 = scmp.eq.s32.totalorder %s15, 0
      %p56 = por %p54, %p55
      %p57 = scmp.ne.s32.totalorder %s49, %s51
      %p58 = scmp.eq.s32.totalorder %s20, 1
      %p59 = por %p57, %p58
      %p60 = scmp.ne.s32.totalorder %s51, %s52
      %p61 = scmp.eq.s32.totalorder %s20, 0
      %p62 = por %p60, %p61
      %p63 = scmp.ne.s32.totalorder %s51, %s52
      %p64 = scmp.eq.s32.totalorder %s21, 1
      %p65 = por %p63, %p64
      %p67 = scmp.ne.s32.totalorder %s52, %s66
      %p68 = scmp.eq.s32.totalorder %s21, 0
      %p69 = por %p67, %p68
      %s71 = sadd.s32 %s70, 1
      %p74 = scmp.eq.s32.totalorder %s15, 1
      %p75 = scmp.ne.s32.totalorder %s70, %s72
      %p76 = scmp.eq.s32.totalorder %s15, 0
      %p77 = por %p75, %p76
      %p78 = scmp.ne.s32.totalorder %s70, %s72
      %p79 = scmp.eq.s32.totalorder %s20, 1
      %p80 = por %p78, %p79
      %p81 = scmp.ne.s32.totalorder %s72, %s73
      %p82 = scmp.eq.s32.totalorder %s20, 0
      %p83 = por %p81, %p82
      %p84 = scmp.ne.s32.totalorder %s72, %s73
      %p85 = scmp.eq.s32.totalorder %s21, 1
      %p86 = por %p84, %p85
      %p88 = scmp.ne.s32.totalorder %s73, %s87
      %p89 = scmp.eq.s32.totalorder %s21, 0
      %p90 = por %p88, %p89
      %s92 = sadd.s32 %s91, 1
      %p95 = scmp.eq.s32.totalorder %s15, 1
      %p96 = scmp.ne.s32.totalorder %s91, %s93
      %p97 = scmp.eq.s32.totalorder %s15, 0
      %p98 = por %p96, %p97
      %p99 = scmp.ne.s32.totalorder %s91, %s93
      %p100 = scmp.eq.s32.totalorder %s20, 1
      %p101 = por %p99, %p100
      %p102 = scmp.ne.s32.totalorder %s93, %s94
      %p103 = scmp.eq.s32.totalorder %s20, 0
      %p104 = por %p102, %p103
      %p105 = scmp.ne.s32.totalorder %s93, %s94
      %p106 = scmp.eq.s32.totalorder %s21, 1
      %p107 = por %p105, %p106
      %p109 = scmp.ne.s32.totalorder %s94, %s108
      %p110 = scmp.eq.s32.totalorder %s21, 0
      %p111 = por %p109, %p110
      %s113 = sadd.s32 %s112, 1
      %p116 = scmp.eq.s32.totalorder %s15, 1
      %p117 = scmp.ne.s32.totalorder %s112, %s114
      %p118 = scmp.eq.s32.totalorder %s15, 0
      %p119 = por %p117, %p118
      %p120 = scmp.ne.s32.totalorder %s112, %s114
      %p121 = scmp.eq.s32.totalorder %s20, 1
      %p122 = por %p120, %p121
      %p123 = scmp.ne.s32.totalorder %s114, %s115
      %p124 = scmp.eq.s32.totalorder %s20, 0
      %p125 = por %p123, %p124
      %p126 = scmp.ne.s32.totalorder %s114, %s115
      %p127 = scmp.eq.s32.totalorder %s21, 1
      %p128 = por %p126, %p127
      %p130 = scmp.ne.s32.totalorder %s115, %s129
      %p131 = scmp.eq.s32.totalorder %s21, 0
      %p132 = por %p130, %p131
      %s134 = sadd.s32 %s133, 1
      %p137 = scmp.eq.s32.totalorder %s15, 1
      %p138 = scmp.ne.s32.totalorder %s133, %s135
      %p139 = scmp.eq.s32.totalorder %s15, 0
      %p140 = por %p138, %p139
      %p141 = scmp.ne.s32.totalorder %s133, %s135
      %p142 = scmp.eq.s32.totalorder %s20, 1
      %p143 = por %p141, %p142
      %p144 = scmp.ne.s32.totalorder %s135, %s136
      %p145 = scmp.eq.s32.totalorder %s20, 0
      %p146 = por %p144, %p145
      %p147 = scmp.ne.s32.totalorder %s135, %s136
      %p148 = scmp.eq.s32.totalorder %s21, 1
      %p149 = por %p147, %p148
      %p151 = scmp.ne.s32.totalorder %s136, %s150
      %p152 = scmp.eq.s32.totalorder %s21, 0
      %p153 = por %p151, %p152
      %s155 = sadd.s32 %s154, 1
      %p158 = scmp.eq.s32.totalorder %s15, 1
      %p159 = scmp.ne.s32.totalorder %s154, %s156
      %p160 = scmp.eq.s32.totalorder %s15, 0
      %p161 = por %p159, %p160
      %p162 = scmp.ne.s32.totalorder %s154, %s156
      %p163 = scmp.eq.s32.totalorder %s20, 1
      %p164 = por %p162, %p163
      %p165 = scmp.ne.s32.totalorder %s156, %s157
      %p166 = scmp.eq.s32.totalorder %s20, 0
      %p167 = por %p165, %p166
      %p168 = scmp.ne.s32.totalorder %s156, %s157
      %p169 = scmp.eq.s32.totalorder %s21, 1
      %p170 = por %p168, %p169
      %p172 = scmp.ne.s32.totalorder %s157, %s171
      %p173 = scmp.eq.s32.totalorder %s21, 0
      %p174 = por %p172, %p173
      %s175 = ssub.s32 %s15, %s22
      %p176 = scmp.eq.s32.totalorder %s175, 0
      %s178 = sadd.s32 %s177, 1
      %s179 = scalar_select %p176, %s177, %s178
      %p182 = pneg %p176
      %p183 = scmp.eq.s32.totalorder %s15, 1
      %p184 = por %p182, %p183
      %p185 = scmp.ne.s32.totalorder %s177, %s180
      %p186 = scmp.eq.s32.totalorder %s15, 0
      %p187 = por %p185, %p186
      %p188 = scmp.ne.s32.totalorder %s177, %s180
      %p189 = scmp.eq.s32.totalorder %s20, 1
      %p190 = por %p188, %p189
      %p191 = scmp.ne.s32.totalorder %s180, %s181
      %p192 = scmp.eq.s32.totalorder %s20, 0
      %p193 = por %p191, %p192
      %p194 = scmp.ne.s32.totalorder %s180, %s181
      %p195 = scmp.eq.s32.totalorder %s21, 1
      %p196 = por %p194, %p195
      %p198 = scmp.ne.s32.totalorder %s181, %s197
      %p199 = scmp.eq.s32.totalorder %s21, 0
      %p200 = por %p198, %p199
      %p201 = scmp.le.s32.totalorder 1, %s15
      %p202 = scmp.lt.s32.totalorder %s15, 3
      %p203 = pnand %p201, %p202
      %p204 = pneg %p203
      // Predicated region
      $region9: #{helmholtz_loss_pde_fd.1} parent=5 // pred_check
        _
      $region10: #{helmholtz_loss_pde_fd.1} parent=5 // pred_check_branch
        %206 = sbr.rel (%p203) target = $region12
      $region11: #{helmholtz_loss_pde_fd.1} parent=5 // pred_region
        %s207 = ssub.s32 %s15, 1
        // Predicated region
        $region13: #{helmholtz_loss_pde_fd.1} parent=11 // pred_check
          %p208 = pneg %p62
        $region14: #{helmholtz_loss_pde_fd.1} parent=11 // pred_check_branch
          %210 = sbr.rel (%p208) target = $region16
        $region15: #{helmholtz_loss_pde_fd.1} parent=11 // pred_region
          _
        $region16: #{helmholtz_loss_pde_fd.1} parent=11 // pred_fallthru
          _
        // Predicated region
        $region17: #{helmholtz_loss_pde_fd.1} parent=11 // pred_check
          %p211 = pneg %p83
        $region18: #{helmholtz_loss_pde_fd.1} parent=11 // pred_check_branch
          %213 = sbr.rel (%p211) target = $region20
        $region19: #{helmholtz_loss_pde_fd.1} parent=11 // pred_region
          _
        $region20: #{helmholtz_loss_pde_fd.1} parent=11 // pred_fallthru
          _
        // Predicated region
        $region21: #{helmholtz_loss_pde_fd.1} parent=11 // pred_check
          %p214 = pneg %p104
        $region22: #{helmholtz_loss_pde_fd.1} parent=11 // pred_check_branch
          %216 = sbr.rel (%p214) target = $region24
        $region23: #{helmholtz_loss_pde_fd.1} parent=11 // pred_region
          _
        $region24: #{helmholtz_loss_pde_fd.1} parent=11 // pred_fallthru
          _
        // Predicated region
        $region25: #{helmholtz_loss_pde_fd.1} parent=11 // pred_check
          %p217 = pneg %p125
        $region26: #{helmholtz_loss_pde_fd.1} parent=11 // pred_check_branch
          %219 = sbr.rel (%p217) target = $region28
        $region27: #{helmholtz_loss_pde_fd.1} parent=11 // pred_region
          _
        $region28: #{helmholtz_loss_pde_fd.1} parent=11 // pred_fallthru
          _
        // Predicated region
        $region29: #{helmholtz_loss_pde_fd.1} parent=11 // pred_check
          %p220 = pneg %p146
        $region30: #{helmholtz_loss_pde_fd.1} parent=11 // pred_check_branch
          %222 = sbr.rel (%p220) target = $region32
        $region31: #{helmholtz_loss_pde_fd.1} parent=11 // pred_region
          _
        $region32: #{helmholtz_loss_pde_fd.1} parent=11 // pred_fallthru
          _
        // Predicated region
        $region33: #{helmholtz_loss_pde_fd.1} parent=11 // pred_check
          %p223 = pneg %p167
        $region34: #{helmholtz_loss_pde_fd.1} parent=11 // pred_check_branch
          %225 = sbr.rel (%p223) target = $region36
        $region35: #{helmholtz_loss_pde_fd.1} parent=11 // pred_region
          _
        $region36: #{helmholtz_loss_pde_fd.1} parent=11 // pred_fallthru
          _
      $region12: #{helmholtz_loss_pde_fd.1} parent=5 // pred_fallthru
        _
      %p226 = scmp.lt.s32.totalorder %s15, 2
      // Predicated region
      $region37: #{helmholtz_loss_pde_fd.1} parent=5 // pred_check
        %p227 = pneg %p226
      $region38: #{helmholtz_loss_pde_fd.1} parent=5 // pred_check_branch
        %229 = sbr.rel (%p227) target = $region40
      $region39: #{helmholtz_loss_pde_fd.1} parent=5 // pred_region
        // Predicated region
        $region41: #{helmholtz_loss_pde_fd.1} parent=39 // pred_check
          %p230 = pneg %p35
        $region42: #{helmholtz_loss_pde_fd.1} parent=39 // pred_check_branch
          %232 = sbr.rel (%p230) target = $region44
        $region43: #{helmholtz_loss_pde_fd.1} parent=39 // pred_region
          %s233 = sand.u32 %s25, 1
          %s234 = sand.u32 %s25, 1
          %s235 = smul.addr %s234, 16
          %s236 = scalar_lea.vmem [#allocation5], %s235
          %s237 = smul.addr %s15, 8
          %s238 = scalar_lea.vmem %s1, %s237
          // Predicated region
          $region45: #{helmholtz_loss_pde_fd.1} parent=43 // pred_check
            _
          $region46: #{helmholtz_loss_pde_fd.1} parent=43 // pred_check_branch
            %240 = sbr.rel (0) target = $region48
          $region47: #{helmholtz_loss_pde_fd.1} parent=43 // pred_region
            // Predicated region
            $region49: #{helmholtz_loss_pde_fd.1} parent=47 // pred_check
              _
            $region50: #{helmholtz_loss_pde_fd.1} parent=47 // pred_check_branch
              %242 = sbr.rel (0) target = $region52
            $region51: #{helmholtz_loss_pde_fd.1} parent=47 // pred_region
              // Predicated region
              $region64: #{helmholtz_loss_pde_fd.1} parent=51 // pred_check
                _
              $region65: #{helmholtz_loss_pde_fd.1} parent=51 // pred_check_branch
                %259 = sbr.rel (0) target = $region67
              $region66: #{helmholtz_loss_pde_fd.1} parent=51 // pred_region
                loop: start=0, step=1, limit=1
                $region68: #{helmholtz_loss_pde_fd.1} parent=66 // loop_pre_header
                  _
                $region69: #{helmholtz_loss_pde_fd.1} parent=66 // loop_header
                  %s261 = sphi 0, %s265
                  %p262 = scmp.ge.s32.totalorder %s261, 1
                  %s266 = sphi %s238, %s238
                  %s267 = sphi %s236, %s236
                $region70: #{helmholtz_loss_pde_fd.1} parent=66 // loop_header_branch
                  %264 = sbr.rel (%p262) target = $region74
                $region71: #{helmholtz_loss_pde_fd.1} parent=66 // loop_body
                  %v268 = vld [vmem:[%s266] sm:$0xff]
                  %269 = vst [vmem:[%s267] sm:$0xff] %v268
                  %v270 = vld [vmem:[%s266 + $0x10] sm:$0xff]
                  %271 = vst [vmem:[%s267 + $0x8] sm:$0xff] %v270
                $region72: #{helmholtz_loss_pde_fd.1} parent=66 // loop_footer
                  %s265 = sadd.s32 1, %s261
                $region73: #{helmholtz_loss_pde_fd.1} parent=66 // loop_footer_branch
                  %260 = sbr.rel target = $region69
                $region74: #{helmholtz_loss_pde_fd.1} parent=66 // loop_exit
                  _
              $region67: #{helmholtz_loss_pde_fd.1} parent=51 // pred_fallthru
                _
              // Predicated region
              $region75: #{helmholtz_loss_pde_fd.1} parent=51 // pred_check
                _
              $region76: #{helmholtz_loss_pde_fd.1} parent=51 // pred_check_branch
                %273 = sbr.rel target = $region78
              $region77: #{helmholtz_loss_pde_fd.1} parent=51 // pred_region
                _
              $region78: #{helmholtz_loss_pde_fd.1} parent=51 // pred_fallthru
                _
            $region52: #{helmholtz_loss_pde_fd.1} parent=47 // pred_fallthru
              _
            // Predicated region
            $region53: #{helmholtz_loss_pde_fd.1} parent=47 // pred_check
              _
            $region54: #{helmholtz_loss_pde_fd.1} parent=47 // pred_check_branch
              %244 = sbr.rel target = $region56
            $region55: #{helmholtz_loss_pde_fd.1} parent=47 // pred_region
              loop: start=0, step=1, limit=1
              $region57: #{helmholtz_loss_pde_fd.1} parent=55 // loop_pre_header
                _
              $region58: #{helmholtz_loss_pde_fd.1} parent=55 // loop_header
                %s247 = sphi 0, %s251
                %p248 = scmp.ge.s32.totalorder %s247, 1
                %s252 = sphi %s238, %s238
                %s253 = sphi %s236, %s236
              $region59: #{helmholtz_loss_pde_fd.1} parent=55 // loop_header_branch
                %250 = sbr.rel (%p248) target = $region63
              $region60: #{helmholtz_loss_pde_fd.1} parent=55 // loop_body
                %v254 = vld [vmem:[%s252] sm:$0xff]
                %255 = vst [vmem:[%s253] sm:$0xff] %v254
                %v256 = vld [vmem:[%s252 + $0x10] sm:$0xff]
                %257 = vst [vmem:[%s253 + $0x8] sm:$0xff] %v256
              $region61: #{helmholtz_loss_pde_fd.1} parent=55 // loop_footer
                %s251 = sadd.s32 1, %s247
              $region62: #{helmholtz_loss_pde_fd.1} parent=55 // loop_footer_branch
                %246 = sbr.rel target = $region58
              $region63: #{helmholtz_loss_pde_fd.1} parent=55 // loop_exit
                _
            $region56: #{helmholtz_loss_pde_fd.1} parent=47 // pred_fallthru
              _
          $region48: #{helmholtz_loss_pde_fd.1} parent=43 // pred_fallthru
            _
          %274 = vnop
        $region44: #{helmholtz_loss_pde_fd.1} parent=39 // pred_fallthru
          _
      $region40: #{helmholtz_loss_pde_fd.1} parent=5 // pred_fallthru
        _
      %p275 = scmp.le.s32.totalorder 1, %s15
      %p276 = scmp.lt.s32.totalorder %s15, 3
      %p277 = pnand %p275, %p276
      %p278 = pneg %p277
      // Predicated region
      $region79: #{helmholtz_loss_pde_fd.1} parent=5 // pred_check
        _
      $region80: #{helmholtz_loss_pde_fd.1} parent=5 // pred_check_branch
        %280 = sbr.rel (%p277) target = $region82
      $region81: #{helmholtz_loss_pde_fd.1} parent=5 // pred_region
        %s281 = ssub.s32 %s15, 1
        %s282 = sand.u32 %s28, 1
        %s283 = sand.u32 %s28, 1
        %s284 = smul.addr %s283, 16
        %s285 = scalar_lea.vmem [#allocation5], %s284
        // Predicated region
        $region83: #{helmholtz_loss_pde_fd.1} parent=81 // pred_check
          %p286 = pneg %p41
        $region84: #{helmholtz_loss_pde_fd.1} parent=81 // pred_check_branch
          %288 = sbr.rel (%p286) target = $region86
        $region85: #{helmholtz_loss_pde_fd.1} parent=81 // pred_region
          _
        $region86: #{helmholtz_loss_pde_fd.1} parent=81 // pred_fallthru
          _
        %s289 = sand.u32 %s28, 1
        %s290 = sand.u32 %s28, 1
        %s291 = smul.addr %s290, 16
        %s292 = scalar_lea.vmem [#allocation5], %s291
        %p293 = pneg %p41
        %p294 = pneg %p38
        %p295 = pneg %p62
        %p296 = pneg %p59
        %p297 = pneg %p83
        %p298 = pneg %p80
        %p299 = pneg %p104
        %p300 = pneg %p101
        %p301 = pneg %p125
        %p302 = pneg %p122
        %p303 = pneg %p146
        %p304 = pneg %p143
        %p305 = pneg %p167
        %p306 = pneg %p164
        %p307 = pneg %p193
        %p308 = pneg %p190
        %p309 = scmp.lt.s32.totalorder %s20, 1
        %s310 = scalar_select %p309, %s20, 1
        %s311 = smul.addr %s310, 8
        %s312 = scalar_lea.vmem %s8, %s311
        %p313 = scmp.lt.s32.totalorder %s20, 1
        %s314 = scalar_select %p313, %s20, 1
        %s315 = smul.addr %s314, 8
        %s316 = scalar_lea.vmem %s8, %s315
        %s317 = sld [smem:[#allocation4]]
        %v318 = vld [vmem:[%s285] sm:$0x1]
        %v319 = vld [vmem:[%s285 + $0x1] sm:$0x1]
        %v320 = vld [vmem:[%s285 + $0x2] sm:$0x1]
        %v321 = vld [vmem:[%s285 + $0x3] sm:$0x1]
        %v322 = vld [vmem:[%s285 + $0x4] sm:$0x1]
        %v323 = vld [vmem:[%s285 + $0x5] sm:$0x3]
        %v324 = vld [vmem:[%s285 + $0x7] sm:$0x3]
        %v325 = vld [vmem:[%s2] sm:$0xff]
        %v326 = vld [vmem:[%s2 + $0x8] sm:$0xff]
        %v327 = vld [vmem:[%s2 + $0x10] sm:$0xff]
        %v328 = vld [vmem:[%s2 + $0x18] sm:$0xff]
        %v329 = vld [vmem:[%s285] sm:$0xff]
        %v330 = vld [vmem:[%s285 + $0x8] sm:$0xff]
        %vm331 = vcmask 130048
        %v333 = vsel %vm331, %v325, 0
        %v336 = vsel %vm331, %v326, 0
        %v339 = vsel %vm331, %v327, 0
        %v342 = vsel %vm331, %v328, 0
        %344 = vmatprep.subr.mxu0 0.0
        %345 = vmatpush1.msra.mxu0 %v329
        %346 = vmatprep.subr.mxu0 0.0
        %347 = vmatpush1.msra.mxu0 %v330
        %348 = vmatprep.subr.mxu0 0.0
        %349 = vmatpush1.msra.mxu0 0.0
        %350 = vmatprep.subr.mxu0 0.0
        %351 = vmatpush1.msra.mxu0 0.0
        %352 = vmatprep.subr.mxu0 0.0
        %353 = vmatpush1.msra.mxu0 0.0
        %354 = vmatprep.subr.mxu0 0.0
        %355 = vmatpush1.msra.mxu0 0.0
        %356 = vmatprep.subr.mxu0 0.0
        %357 = vmatpush1.msra.mxu0 0.0
        %358 = vmatprep.subr.mxu0 0.0
        %359 = vmatpush1.msra.mxu0 0.0
        %360 = vmatprep.subr.mxu0 0.0
        %361 = vmatpush1.msra.mxu0 0.0
        %362 = vmatprep.subr.mxu0 0.0
        %363 = vmatpush1.msra.mxu0 0.0
        %364 = vmatprep.subr.mxu0 0.0
        %365 = vmatpush1.msra.mxu0 0.0
        %366 = vmatprep.subr.mxu0 0.0
        %367 = vmatpush1.msra.mxu0 0.0
        %368 = vmatprep.subr.mxu0 0.0
        %369 = vmatpush1.msra.mxu0 0.0
        %370 = vmatprep.subr.mxu0 0.0
        %371 = vmatpush1.msra.mxu0 0.0
        %372 = vmatprep.subr.mxu0 0.0
        %373 = vmatpush1.msra.mxu0 0.0
        %374 = vmatprep.subr.mxu0 0.0
        %375 = vmatpush1.msra.mxu0 0.0
        %376 = vmatprep.subr.mxu0 0.0
        %377 = vmatpush1.msra.mxu0 0.0
        %378 = vmatprep.subr.mxu0 0.0
        %379 = vmatpush1.msra.mxu0 0.0
        %380 = vmatprep.subr.mxu0 0.0
        %381 = vmatpush1.msra.mxu0 0.0
        %382 = vmatprep.subr.mxu0 0.0
        %383 = vmatpush1.msra.mxu0 0.0
        %384 = vmatprep.subr.mxu0 0.0
        %385 = vmatpush1.msra.mxu0 0.0
        %386 = vmatprep.subr.mxu0 0.0
        %387 = vmatpush1.msra.mxu0 0.0
        %388 = vmatprep.subr.mxu0 0.0
        %389 = vmatpush1.msra.mxu0 0.0
        %390 = vmatprep.subr.mxu0 0.0
        %391 = vmatpush1.msra.mxu0 0.0
        %392 = vmatprep.subr.mxu0 0.0
        %393 = vmatpush1.msra.mxu0 0.0
        %394 = vmatprep.subr.mxu0 0.0
        %395 = vmatpush1.msra.mxu0 0.0
        %396 = vmatprep.subr.mxu0 0.0
        %397 = vmatpush1.msra.mxu0 0.0
        %398 = vmatprep.subr.mxu0 0.0
        %399 = vmatpush1.msra.mxu0 0.0
        %400 = vmatprep.subr.mxu0 0.0
        %401 = vmatpush1.msra.mxu0 0.0
        %402 = vmatprep.subr.mxu0 0.0
        %403 = vmatpush1.msra.mxu0 0.0
        %404 = vmatprep.subr.mxu0 0.0
        %405 = vmatpush1.msra.mxu0 0.0
        %406 = vmatprep.subr.mxu0 0.0
        %407 = vmatpush1.msra.mxu0 0.0
        %408 = vmatprep.mubr.f32.mxu0 0.0
        %409 = vmatmul.mubr.f32.gmra.mrb[0].mxu0 %v333
        %v410 = vpop.f32.mrb[0].mxu0
        %v411 = vadd.f32 0.0, %v410
        %v412 = vpop.f32.mrb[0].mxu0
        %413 = vmatprep.mubr.f32.mxu0 0.0
        %414 = vmatmul.mubr.f32.gmra.mrb[0].mxu0 %v336
        %v415 = vpop.f32.mrb[0].mxu0
        %v416 = vadd.f32 0.0, %v415
        %v417 = vpop.f32.mrb[0].mxu0
        %418 = vmatprep.mubr.f32.mxu0 0.0
        %419 = vmatmul.mubr.f32.gmra.mrb[0].mxu0 %v339
        %v420 = vpop.f32.mrb[0].mxu0
        %v421 = vadd.f32 0.0, %v420
        %v422 = vpop.f32.mrb[0].mxu0
        %423 = vmatprep.mubr.f32.mxu0 0.0
        %424 = vmatmul.mubr.f32.gmra.mrb[0].mxu0 %v342
        %v425 = vpop.f32.mrb[0].mxu0
        %v426 = vadd.f32 0.0, %v425
        %v427 = vpop.f32.mrb[0].mxu0
        %428 = vdwg.mxu0
        %v429 = vand.u32 2147483647, %v411
        %vm430 = vcmp.le.f32.partialorder %v429, 0.7853982
        %vm431 = vcmp.lt.s32.totalorder %v411, 0
        %v432 = vand.u32 %v411, 2139095040
        %v433 = vshrl.u32 %v432, 23
        %v434 = vsub.s32 %v433, 127
        %v435 = vand.u32 2147483647, %v411
        %v436 = vand.u32 %v435, 8388607
        %v437 = vor.u32 %v436, 8388608
        %v438 = vsub.s32 0, %v437
        %v439 = vadd.s32 %v434, 1
        %vm440 = vcmp.gt.s32.totalorder %v439, 0
        %v441 = vsel %vm440, %v439, 0
        %v442 = vshrl.u32 %v441, 5
        %v443 = vand.u32 %v441, 31
        %v444 = vsub.s32 32, %v443
        %v445 = vshrl.u32 683565275, %v444
        %v446 = vshll.u32 683565275, %v443
        %v447 = vshrl.u32 2475754826, %v444
        %v448 = vor.u32 %v446, %v447
        %v449 = vshll.u32 2475754826, %v443
        %v450 = vshrl.u32 2131351028, %v444
        %v451 = vor.u32 %v449, %v450
        %v452 = vshll.u32 2131351028, %v443
        %v453 = vshrl.u32 2102212464, %v444
        %v454 = vor.u32 %v452, %v453
        %v455 = vshll.u32 2102212464, %v443
        %v456 = vshrl.u32 920167782, %v444
        %v457 = vor.u32 %v455, %v456
        %v458 = vshll.u32 920167782, %v443
        %v459 = vshrl.u32 1326507024, %v444
        %v460 = vor.u32 %v458, %v459
        %vm461 = vcmp.lt.s32.totalorder %v442, 1
        %vm462 = vcmp.lt.s32.totalorder %v442, 2
        %vm463 = vcmp.lt.s32.totalorder %v442, 3
        %vm464 = vcmp.lt.s32.totalorder %v442, 4
        %v465 = vsel %vm461, %v445, %v448
        %v466 = vsel %vm464, %v454, 2102212464
        %v467 = vsel %vm463, %v451, %v466
        %v468 = vsel %vm462, %v465, %v467
        %v469 = vsel %vm461, %v448, %v451
        %v470 = vsel %vm464, %v457, 920167782
        %v471 = vsel %vm463, %v454, %v470
        %v472 = vsel %vm462, %v469, %v471
        %v473 = vsel %vm461, %v451, %v454
        %v474 = vsel %vm464, %v460, 1326507024
        %v475 = vsel %vm463, %v457, %v474
        %v476 = vsel %vm462, %v473, %v475
        %v477 = vshll.u32 %v437, 8
        %v478 = vmul.u32.u64.compose %v477, %v476
        %v479 = vextract.low.u32 %v478
        %v480 = vextract.high.u32 %v478
        %v481 = vmul.u32.u64.compose %v477, %v472
        %v482 = vextract.low.u32 %v481
        %v483 = vextract.high.u32 %v481
        %v484 = vmul.u32 %v477, %v468
        %v485 = vadd.s32 %v480, %v482
        %vm486 = vc.u32 %v480, %v482
        %v487 = vadd.s32 %v483, 1
        %v488 = vsel %vm486, %v487, %v483
        %v489 = vadd.s32 %v484, %v488
        %v490 = vadd.s32 %v489, 536870912
        %v491 = vshrl.u32 %v490, 30
        %v492 = vshll.u32 %v491, 30
        %v493 = vsub.s32 %v489, %v492
        %vm494 = vcmp.lt.s32.totalorder %v493, 0
        %v495 = vsub.s32 0, %v493
        %v496 = vsel %vm494, %v495, %v493
        %v497 = vclz %v496
        %v498 = vsub.s32 %v497, 2
        %vm499 = vcmp.gt.s32.totalorder 0, %v498
        %v500 = vsel %vm499, 0, %v498
        %v501 = vsub.s32 32, %v500
        %v502 = vshll.u32 %v493, %v500
        %v503 = vshrl.u32 %v485, %v501
        %v504 = vor.u32 %v502, %v503
        %v505 = vsub.s32 4294967266, %v500
        %v506 = vadd.s32 %v505, 127
        %v507 = vshll.u32 %v506, 23
        %v508 = vor.u32 4788187, %v507
        %v509 = vand.u32 2147483647, %v508
        %v511 = vcvt.s32.f32 %v504
        %v512 = vmul.f32 %v511, %v509
        %v513 = vxor.u32 %v512, 2147483648
        %v514 = vsel %vm431, %v513, %v512
        %v515 = vsub.s32 4, %v491
        %v516 = vsel %vm431, %v515, %v491
        %v517 = vsel %vm430, %v411, %v514
        %v518 = vsel %vm430, 0, %v516
        %v519 = vcosq.f32.pop %v517
        %v520 = vsinq.f32.pop %v517
        %vm521 = vweird.f32 %v411
        %v522 = vadd.s32 %v518, 3
        %v523 = vand.u32 %v522, 3
        %vm524 = vcmp.lt.s32.totalorder %v523, 2
        %vm525 = vcmp.eq.s32.totalorder %v523, 0
        %v526 = vxor.u32 %v520, 2147483648
        %v527 = vsel %vm525, %v519, %v526
        %vm528 = vcmp.eq.s32.totalorder %v523, 2
        %v529 = vxor.u32 %v519, 2147483648
        %v530 = vsel %vm528, %v529, %v520
        %v531 = vsel %vm524, %v527, %v530
        %v532 = vsel %vm521, nan, %v531
        %v533 = vand.u32 2147483647, %v416
        %vm534 = vcmp.le.f32.partialorder %v533, 0.7853982
        %vm535 = vcmp.lt.s32.totalorder %v416, 0
        %v536 = vand.u32 %v416, 2139095040
        %v537 = vshrl.u32 %v536, 23
        %v538 = vsub.s32 %v537, 127
        %v539 = vand.u32 2147483647, %v416
        %v540 = vand.u32 %v539, 8388607
        %v541 = vor.u32 %v540, 8388608
        %v542 = vsub.s32 0, %v541
        %v543 = vadd.s32 %v538, 1
        %vm544 = vcmp.gt.s32.totalorder %v543, 0
        %v545 = vsel %vm544, %v543, 0
        %v546 = vshrl.u32 %v545, 5
        %v547 = vand.u32 %v545, 31
        %v548 = vsub.s32 32, %v547
        %v549 = vshrl.u32 683565275, %v548
        %v550 = vshll.u32 683565275, %v547
        %v551 = vshrl.u32 2475754826, %v548
        %v552 = vor.u32 %v550, %v551
        %v553 = vshll.u32 2475754826, %v547
        %v554 = vshrl.u32 2131351028, %v548
        %v555 = vor.u32 %v553, %v554
        %v556 = vshll.u32 2131351028, %v547
        %v557 = vshrl.u32 2102212464, %v548
        %v558 = vor.u32 %v556, %v557
        %v559 = vshll.u32 2102212464, %v547
        %v560 = vshrl.u32 920167782, %v548
        %v561 = vor.u32 %v559, %v560
        %v562 = vshll.u32 920167782, %v547
        %v563 = vshrl.u32 1326507024, %v548
        %v564 = vor.u32 %v562, %v563
        %vm565 = vcmp.lt.s32.totalorder %v546, 1
        %vm566 = vcmp.lt.s32.totalorder %v546, 2
        %vm567 = vcmp.lt.s32.totalorder %v546, 3
        %vm568 = vcmp.lt.s32.totalorder %v546, 4
        %v569 = vsel %vm565, %v549, %v552
        %v570 = vsel %vm568, %v558, 2102212464
        %v571 = vsel %vm567, %v555, %v570
        %v572 = vsel %vm566, %v569, %v571
        %v573 = vsel %vm565, %v552, %v555
        %v574 = vsel %vm568, %v561, 920167782
        %v575 = vsel %vm567, %v558, %v574
        %v576 = vsel %vm566, %v573, %v575
        %v577 = vsel %vm565, %v555, %v558
        %v578 = vsel %vm568, %v564, 1326507024
        %v579 = vsel %vm567, %v561, %v578
        %v580 = vsel %vm566, %v577, %v579
        %v581 = vshll.u32 %v541, 8
        %v582 = vmul.u32.u64.compose %v581, %v580
        %v583 = vextract.low.u32 %v582
        %v584 = vextract.high.u32 %v582
        %v585 = vmul.u32.u64.compose %v581, %v576
        %v586 = vextract.low.u32 %v585
        %v587 = vextract.high.u32 %v585
        %v588 = vmul.u32 %v581, %v572
        %v589 = vadd.s32 %v584, %v586
        %vm590 = vc.u32 %v584, %v586
        %v591 = vadd.s32 %v587, 1
        %v592 = vsel %vm590, %v591, %v587
        %v593 = vadd.s32 %v588, %v592
        %v594 = vadd.s32 %v593, 536870912
        %v595 = vshrl.u32 %v594, 30
        %v596 = vshll.u32 %v595, 30
        %v597 = vsub.s32 %v593, %v596
        %vm598 = vcmp.lt.s32.totalorder %v597, 0
        %v599 = vsub.s32 0, %v597
        %v600 = vsel %vm598, %v599, %v597
        %v601 = vclz %v600
        %v602 = vsub.s32 %v601, 2
        %vm603 = vcmp.gt.s32.totalorder 0, %v602
        %v604 = vsel %vm603, 0, %v602
        %v605 = vsub.s32 32, %v604
        %v606 = vshll.u32 %v597, %v604
        %v607 = vshrl.u32 %v589, %v605
        %v608 = vor.u32 %v606, %v607
        %v609 = vsub.s32 4294967266, %v604
        %v610 = vadd.s32 %v609, 127
        %v611 = vshll.u32 %v610, 23
        %v612 = vor.u32 4788187, %v611
        %v613 = vand.u32 2147483647, %v612
        %v615 = vcvt.s32.f32 %v608
        %v616 = vmul.f32 %v615, %v613
        %v617 = vxor.u32 %v616, 2147483648
        %v618 = vsel %vm535, %v617, %v616
        %v619 = vsub.s32 4, %v595
        %v620 = vsel %vm535, %v619, %v595
        %v621 = vsel %vm534, %v416, %v618
        %v622 = vsel %vm534, 0, %v620
        %v623 = vcosq.f32.pop %v621
        %v624 = vsinq.f32.pop %v621
        %vm625 = vweird.f32 %v416
        %v626 = vadd.s32 %v622, 3
        %v627 = vand.u32 %v626, 3
        %vm628 = vcmp.lt.s32.totalorder %v627, 2
        %vm629 = vcmp.eq.s32.totalorder %v627, 0
        %v630 = vxor.u32 %v624, 2147483648
        %v631 = vsel %vm629, %v623, %v630
        %vm632 = vcmp.eq.s32.totalorder %v627, 2
        %v633 = vxor.u32 %v623, 2147483648
        %v634 = vsel %vm632, %v633, %v624
        %v635 = vsel %vm628, %v631, %v634
        %v636 = vsel %vm625, nan, %v635
        %v637 = vand.u32 2147483647, %v421
        %vm638 = vcmp.le.f32.partialorder %v637, 0.7853982
        %vm639 = vcmp.lt.s32.totalorder %v421, 0
        %v640 = vand.u32 %v421, 2139095040
        %v641 = vshrl.u32 %v640, 23
        %v642 = vsub.s32 %v641, 127
        %v643 = vand.u32 2147483647, %v421
        %v644 = vand.u32 %v643, 8388607
        %v645 = vor.u32 %v644, 8388608
        %v646 = vsub.s32 0, %v645
        %v647 = vadd.s32 %v642, 1
        %vm648 = vcmp.gt.s32.totalorder %v647, 0
        %v649 = vsel %vm648, %v647, 0
        %v650 = vshrl.u32 %v649, 5
        %v651 = vand.u32 %v649, 31
        %v652 = vsub.s32 32, %v651
        %v653 = vshrl.u32 683565275, %v652
        %v654 = vshll.u32 683565275, %v651
        %v655 = vshrl.u32 2475754826, %v652
        %v656 = vor.u32 %v654, %v655
        %v657 = vshll.u32 2475754826, %v651
        %v658 = vshrl.u32 2131351028, %v652
        %v659 = vor.u32 %v657, %v658
        %v660 = vshll.u32 2131351028, %v651
        %v661 = vshrl.u32 2102212464, %v652
        %v662 = vor.u32 %v660, %v661
        %v663 = vshll.u32 2102212464, %v651
        %v664 = vshrl.u32 920167782, %v652
        %v665 = vor.u32 %v663, %v664
        %v666 = vshll.u32 920167782, %v651
        %v667 = vshrl.u32 1326507024, %v652
        %v668 = vor.u32 %v666, %v667
        %vm669 = vcmp.lt.s32.totalorder %v650, 1
        %vm670 = vcmp.lt.s32.totalorder %v650, 2
        %vm671 = vcmp.lt.s32.totalorder %v650, 3
        %vm672 = vcmp.lt.s32.totalorder %v650, 4
        %v673 = vsel %vm669, %v653, %v656
        %v674 = vsel %vm672, %v662, 2102212464
        %v675 = vsel %vm671, %v659, %v674
        %v676 = vsel %vm670, %v673, %v675
        %v677 = vsel %vm669, %v656, %v659
        %v678 = vsel %vm672, %v665, 920167782
        %v679 = vsel %vm671, %v662, %v678
        %v680 = vsel %vm670, %v677, %v679
        %v681 = vsel %vm669, %v659, %v662
        %v682 = vsel %vm672, %v668, 1326507024
        %v683 = vsel %vm671, %v665, %v682
        %v684 = vsel %vm670, %v681, %v683
        %v685 = vshll.u32 %v645, 8
        %v686 = vmul.u32.u64.compose %v685, %v684
        %v687 = vextract.low.u32 %v686
        %v688 = vextract.high.u32 %v686
        %v689 = vmul.u32.u64.compose %v685, %v680
        %v690 = vextract.low.u32 %v689
        %v691 = vextract.high.u32 %v689
        %v692 = vmul.u32 %v685, %v676
        %v693 = vadd.s32 %v688, %v690
        %vm694 = vc.u32 %v688, %v690
        %v695 = vadd.s32 %v691, 1
        %v696 = vsel %vm694, %v695, %v691
        %v697 = vadd.s32 %v692, %v696
        %v698 = vadd.s32 %v697, 536870912
        %v699 = vshrl.u32 %v698, 30
        %v700 = vshll.u32 %v699, 30
        %v701 = vsub.s32 %v697, %v700
        %vm702 = vcmp.lt.s32.totalorder %v701, 0
        %v703 = vsub.s32 0, %v701
        %v704 = vsel %vm702, %v703, %v701
        %v705 = vclz %v704
        %v706 = vsub.s32 %v705, 2
        %vm707 = vcmp.gt.s32.totalorder 0, %v706
        %v708 = vsel %vm707, 0, %v706
        %v709 = vsub.s32 32, %v708
        %v710 = vshll.u32 %v701, %v708
        %v711 = vshrl.u32 %v693, %v709
        %v712 = vor.u32 %v710, %v711
        %v713 = vsub.s32 4294967266, %v708
        %v714 = vadd.s32 %v713, 127
        %v715 = vshll.u32 %v714, 23
        %v716 = vor.u32 4788187, %v715
        %v717 = vand.u32 2147483647, %v716
        %v719 = vcvt.s32.f32 %v712
        %v720 = vmul.f32 %v719, %v717
        %v721 = vxor.u32 %v720, 2147483648
        %v722 = vsel %vm639, %v721, %v720
        %v723 = vsub.s32 4, %v699
        %v724 = vsel %vm639, %v723, %v699
        %v725 = vsel %vm638, %v421, %v722
        %v726 = vsel %vm638, 0, %v724
        %v727 = vcosq.f32.pop %v725
        %v728 = vsinq.f32.pop %v725
        %vm729 = vweird.f32 %v421
        %v730 = vadd.s32 %v726, 3
        %v731 = vand.u32 %v730, 3
        %vm732 = vcmp.lt.s32.totalorder %v731, 2
        %vm733 = vcmp.eq.s32.totalorder %v731, 0
        %v734 = vxor.u32 %v728, 2147483648
        %v735 = vsel %vm733, %v727, %v734
        %vm736 = vcmp.eq.s32.totalorder %v731, 2
        %v737 = vxor.u32 %v727, 2147483648
        %v738 = vsel %vm736, %v737, %v728
        %v739 = vsel %vm732, %v735, %v738
        %v740 = vsel %vm729, nan, %v739
        %v741 = vand.u32 2147483647, %v426
        %vm742 = vcmp.le.f32.partialorder %v741, 0.7853982
        %vm743 = vcmp.lt.s32.totalorder %v426, 0
        %v744 = vand.u32 %v426, 2139095040
        %v745 = vshrl.u32 %v744, 23
        %v746 = vsub.s32 %v745, 127
        %v747 = vand.u32 2147483647, %v426
        %v748 = vand.u32 %v747, 8388607
        %v749 = vor.u32 %v748, 8388608
        %v750 = vsub.s32 0, %v749
        %v751 = vadd.s32 %v746, 1
        %vm752 = vcmp.gt.s32.totalorder %v751, 0
        %v753 = vsel %vm752, %v751, 0
        %v754 = vshrl.u32 %v753, 5
        %v755 = vand.u32 %v753, 31
        %v756 = vsub.s32 32, %v755
        %v757 = vshrl.u32 683565275, %v756
        %v758 = vshll.u32 683565275, %v755
        %v759 = vshrl.u32 2475754826, %v756
        %v760 = vor.u32 %v758, %v759
        %v761 = vshll.u32 2475754826, %v755
        %v762 = vshrl.u32 2131351028, %v756
        %v763 = vor.u32 %v761, %v762
        %v764 = vshll.u32 2131351028, %v755
        %v765 = vshrl.u32 2102212464, %v756
        %v766 = vor.u32 %v764, %v765
        %v767 = vshll.u32 2102212464, %v755
        %v768 = vshrl.u32 920167782, %v756
        %v769 = vor.u32 %v767, %v768
        %v770 = vshll.u32 920167782, %v755
        %v771 = vshrl.u32 1326507024, %v756
        %v772 = vor.u32 %v770, %v771
        %vm773 = vcmp.lt.s32.totalorder %v754, 1
        %vm774 = vcmp.lt.s32.totalorder %v754, 2
        %vm775 = vcmp.lt.s32.totalorder %v754, 3
        %vm776 = vcmp.lt.s32.totalorder %v754, 4
        %v777 = vsel %vm773, %v757, %v760
        %v778 = vsel %vm776, %v766, 2102212464
        %v779 = vsel %vm775, %v763, %v778
        %v780 = vsel %vm774, %v777, %v779
        %v781 = vsel %vm773, %v760, %v763
        %v782 = vsel %vm776, %v769, 920167782
        %v783 = vsel %vm775, %v766, %v782
        %v784 = vsel %vm774, %v781, %v783
        %v785 = vsel %vm773, %v763, %v766
        %v786 = vsel %vm776, %v772, 1326507024
        %v787 = vsel %vm775, %v769, %v786
        %v788 = vsel %vm774, %v785, %v787
        %v789 = vshll.u32 %v749, 8
        %v790 = vmul.u32.u64.compose %v789, %v788
        %v791 = vextract.low.u32 %v790
        %v792 = vextract.high.u32 %v790
        %v793 = vmul.u32.u64.compose %v789, %v784
        %v794 = vextract.low.u32 %v793
        %v795 = vextract.high.u32 %v793
        %v796 = vmul.u32 %v789, %v780
        %v797 = vadd.s32 %v792, %v794
        %vm798 = vc.u32 %v792, %v794
        %v799 = vadd.s32 %v795, 1
        %v800 = vsel %vm798, %v799, %v795
        %v801 = vadd.s32 %v796, %v800
        %v802 = vadd.s32 %v801, 536870912
        %v803 = vshrl.u32 %v802, 30
        %v804 = vshll.u32 %v803, 30
        %v805 = vsub.s32 %v801, %v804
        %vm806 = vcmp.lt.s32.totalorder %v805, 0
        %v807 = vsub.s32 0, %v805
        %v808 = vsel %vm806, %v807, %v805
        %v809 = vclz %v808
        %v810 = vsub.s32 %v809, 2
        %vm811 = vcmp.gt.s32.totalorder 0, %v810
        %v812 = vsel %vm811, 0, %v810
        %v813 = vsub.s32 32, %v812
        %v814 = vshll.u32 %v805, %v812
        %v815 = vshrl.u32 %v797, %v813
        %v816 = vor.u32 %v814, %v815
        %v817 = vsub.s32 4294967266, %v812
        %v818 = vadd.s32 %v817, 127
        %v819 = vshll.u32 %v818, 23
        %v820 = vor.u32 4788187, %v819
        %v821 = vand.u32 2147483647, %v820
        %v823 = vcvt.s32.f32 %v816
        %v824 = vmul.f32 %v823, %v821
        %v825 = vxor.u32 %v824, 2147483648
        %v826 = vsel %vm743, %v825, %v824
        %v827 = vsub.s32 4, %v803
        %v828 = vsel %vm743, %v827, %v803
        %v829 = vsel %vm742, %v426, %v826
        %v830 = vsel %vm742, 0, %v828
        %v831 = vcosq.f32.pop %v829
        %v832 = vsinq.f32.pop %v829
        %vm833 = vweird.f32 %v426
        %v834 = vadd.s32 %v830, 3
        %v835 = vand.u32 %v834, 3
        %vm836 = vcmp.lt.s32.totalorder %v835, 2
        %vm837 = vcmp.eq.s32.totalorder %v835, 0
        %v838 = vxor.u32 %v832, 2147483648
        %v839 = vsel %vm837, %v831, %v838
        %vm840 = vcmp.eq.s32.totalorder %v835, 2
        %v841 = vxor.u32 %v831, 2147483648
        %v842 = vsel %vm840, %v841, %v832
        %v843 = vsel %vm836, %v839, %v842
        %v844 = vsel %vm833, nan, %v843
        %v845 = vand.u32 2147483647, %v411
        %vm846 = vcmp.le.f32.partialorder %v845, 0.7853982
        %vm847 = vcmp.lt.s32.totalorder %v411, 0
        %v848 = vand.u32 %v411, 2139095040
        %v849 = vshrl.u32 %v848, 23
        %v850 = vsub.s32 %v849, 127
        %v851 = vand.u32 2147483647, %v411
        %v852 = vand.u32 %v851, 8388607
        %v853 = vor.u32 %v852, 8388608
        %v854 = vsub.s32 0, %v853
        %v855 = vadd.s32 %v850, 1
        %vm856 = vcmp.gt.s32.totalorder %v855, 0
        %v857 = vsel %vm856, %v855, 0
        %v858 = vshrl.u32 %v857, 5
        %v859 = vand.u32 %v857, 31
        %v860 = vsub.s32 32, %v859
        %v861 = vshrl.u32 683565275, %v860
        %v862 = vshll.u32 683565275, %v859
        %v863 = vshrl.u32 2475754826, %v860
        %v864 = vor.u32 %v862, %v863
        %v865 = vshll.u32 2475754826, %v859
        %v866 = vshrl.u32 2131351028, %v860
        %v867 = vor.u32 %v865, %v866
        %v868 = vshll.u32 2131351028, %v859
        %v869 = vshrl.u32 2102212464, %v860
        %v870 = vor.u32 %v868, %v869
        %v871 = vshll.u32 2102212464, %v859
        %v872 = vshrl.u32 920167782, %v860
        %v873 = vor.u32 %v871, %v872
        %v874 = vshll.u32 920167782, %v859
        %v875 = vshrl.u32 1326507024, %v860
        %v876 = vor.u32 %v874, %v875
        %vm877 = vcmp.lt.s32.totalorder %v858, 1
        %vm878 = vcmp.lt.s32.totalorder %v858, 2
        %vm879 = vcmp.lt.s32.totalorder %v858, 3
        %vm880 = vcmp.lt.s32.totalorder %v858, 4
        %v881 = vsel %vm877, %v861, %v864
        %v882 = vsel %vm880, %v870, 2102212464
        %v883 = vsel %vm879, %v867, %v882
        %v884 = vsel %vm878, %v881, %v883
        %v885 = vsel %vm877, %v864, %v867
        %v886 = vsel %vm880, %v873, 920167782
        %v887 = vsel %vm879, %v870, %v886
        %v888 = vsel %vm878, %v885, %v887
        %v889 = vsel %vm877, %v867, %v870
        %v890 = vsel %vm880, %v876, 1326507024
        %v891 = vsel %vm879, %v873, %v890
        %v892 = vsel %vm878, %v889, %v891
        %v893 = vshll.u32 %v853, 8
        %v894 = vmul.u32.u64.compose %v893, %v892
        %v895 = vextract.low.u32 %v894
        %v896 = vextract.high.u32 %v894
        %v897 = vmul.u32.u64.compose %v893, %v888
        %v898 = vextract.low.u32 %v897
        %v899 = vextract.high.u32 %v897
        %v900 = vmul.u32 %v893, %v884
        %v901 = vadd.s32 %v896, %v898
        %vm902 = vc.u32 %v896, %v898
        %v903 = vadd.s32 %v899, 1
        %v904 = vsel %vm902, %v903, %v899
        %v905 = vadd.s32 %v900, %v904
        %v906 = vadd.s32 %v905, 536870912
        %v907 = vshrl.u32 %v906, 30
        %v908 = vshll.u32 %v907, 30
        %v909 = vsub.s32 %v905, %v908
        %vm910 = vcmp.lt.s32.totalorder %v909, 0
        %v911 = vsub.s32 0, %v909
        %v912 = vsel %vm910, %v911, %v909
        %v913 = vclz %v912
        %v914 = vsub.s32 %v913, 2
        %vm915 = vcmp.gt.s32.totalorder 0, %v914
        %v916 = vsel %vm915, 0, %v914
        %v917 = vsub.s32 32, %v916
        %v918 = vshll.u32 %v909, %v916
        %v919 = vshrl.u32 %v901, %v917
        %v920 = vor.u32 %v918, %v919
        %v921 = vsub.s32 4294967266, %v916
        %v922 = vadd.s32 %v921, 127
        %v923 = vshll.u32 %v922, 23
        %v924 = vor.u32 4788187, %v923
        %v925 = vand.u32 2147483647, %v924
        %v927 = vcvt.s32.f32 %v920
        %v928 = vmul.f32 %v927, %v925
        %v929 = vxor.u32 %v928, 2147483648
        %v930 = vsel %vm847, %v929, %v928
        %v931 = vsub.s32 4, %v907
        %v932 = vsel %vm847, %v931, %v907
        %v933 = vsel %vm846, %v411, %v930
        %v934 = vsel %vm846, 0, %v932
        %v935 = vcosq.f32.pop %v933
        %v936 = vsinq.f32.pop %v933
        %vm937 = vweird.f32 %v411
        %v938 = vand.u32 %v934, 3
        %vm939 = vcmp.lt.s32.totalorder %v938, 2
        %vm940 = vcmp.eq.s32.totalorder %v938, 0
        %v941 = vxor.u32 %v936, 2147483648
        %v942 = vsel %vm940, %v935, %v941
        %vm943 = vcmp.eq.s32.totalorder %v938, 2
        %v944 = vxor.u32 %v935, 2147483648
        %v945 = vsel %vm943, %v944, %v936
        %v946 = vsel %vm939, %v942, %v945
        %v947 = vsel %vm937, nan, %v946
        %v948 = vand.u32 2147483647, %v416
        %vm949 = vcmp.le.f32.partialorder %v948, 0.7853982
        %vm950 = vcmp.lt.s32.totalorder %v416, 0
        %v951 = vand.u32 %v416, 2139095040
        %v952 = vshrl.u32 %v951, 23
        %v953 = vsub.s32 %v952, 127
        %v954 = vand.u32 2147483647, %v416
        %v955 = vand.u32 %v954, 8388607
        %v956 = vor.u32 %v955, 8388608
        %v957 = vsub.s32 0, %v956
        %v958 = vadd.s32 %v953, 1
        %vm959 = vcmp.gt.s32.totalorder %v958, 0
        %v960 = vsel %vm959, %v958, 0
        %v961 = vshrl.u32 %v960, 5
        %v962 = vand.u32 %v960, 31
        %v963 = vsub.s32 32, %v962
        %v964 = vshrl.u32 683565275, %v963
        %v965 = vshll.u32 683565275, %v962
        %v966 = vshrl.u32 2475754826, %v963
        %v967 = vor.u32 %v965, %v966
        %v968 = vshll.u32 2475754826, %v962
        %v969 = vshrl.u32 2131351028, %v963
        %v970 = vor.u32 %v968, %v969
        %v971 = vshll.u32 2131351028, %v962
        %v972 = vshrl.u32 2102212464, %v963
        %v973 = vor.u32 %v971, %v972
        %v974 = vshll.u32 2102212464, %v962
        %v975 = vshrl.u32 920167782, %v963
        %v976 = vor.u32 %v974, %v975
        %v977 = vshll.u32 920167782, %v962
        %v978 = vshrl.u32 1326507024, %v963
        %v979 = vor.u32 %v977, %v978
        %vm980 = vcmp.lt.s32.totalorder %v961, 1
        %vm981 = vcmp.lt.s32.totalorder %v961, 2
        %vm982 = vcmp.lt.s32.totalorder %v961, 3
        %vm983 = vcmp.lt.s32.totalorder %v961, 4
        %v984 = vsel %vm980, %v964, %v967
        %v985 = vsel %vm983, %v973, 2102212464
        %v986 = vsel %vm982, %v970, %v985
        %v987 = vsel %vm981, %v984, %v986
        %v988 = vsel %vm980, %v967, %v970
        %v989 = vsel %vm983, %v976, 920167782
        %v990 = vsel %vm982, %v973, %v989
        %v991 = vsel %vm981, %v988, %v990
        %v992 = vsel %vm980, %v970, %v973
        %v993 = vsel %vm983, %v979, 1326507024
        %v994 = vsel %vm982, %v976, %v993
        %v995 = vsel %vm981, %v992, %v994
        %v996 = vshll.u32 %v956, 8
        %v997 = vmul.u32.u64.compose %v996, %v995
        %v998 = vextract.low.u32 %v997
        %v999 = vextract.high.u32 %v997
        %v1000 = vmul.u32.u64.compose %v996, %v991
        %v1001 = vextract.low.u32 %v1000
        %v1002 = vextract.high.u32 %v1000
        %v1003 = vmul.u32 %v996, %v987
        %v1004 = vadd.s32 %v999, %v1001
        %vm1005 = vc.u32 %v999, %v1001
        %v1006 = vadd.s32 %v1002, 1
        %v1007 = vsel %vm1005, %v1006, %v1002
        %v1008 = vadd.s32 %v1003, %v1007
        %v1009 = vadd.s32 %v1008, 536870912
        %v1010 = vshrl.u32 %v1009, 30
        %v1011 = vshll.u32 %v1010, 30
        %v1012 = vsub.s32 %v1008, %v1011
        %vm1013 = vcmp.lt.s32.totalorder %v1012, 0
        %v1014 = vsub.s32 0, %v1012
        %v1015 = vsel %vm1013, %v1014, %v1012
        %v1016 = vclz %v1015
        %v1017 = vsub.s32 %v1016, 2
        %vm1018 = vcmp.gt.s32.totalorder 0, %v1017
        %v1019 = vsel %vm1018, 0, %v1017
        %v1020 = vsub.s32 32, %v1019
        %v1021 = vshll.u32 %v1012, %v1019
        %v1022 = vshrl.u32 %v1004, %v1020
        %v1023 = vor.u32 %v1021, %v1022
        %v1024 = vsub.s32 4294967266, %v1019
        %v1025 = vadd.s32 %v1024, 127
        %v1026 = vshll.u32 %v1025, 23
        %v1027 = vor.u32 4788187, %v1026
        %v1028 = vand.u32 2147483647, %v1027
        %v1030 = vcvt.s32.f32 %v1023
        %v1031 = vmul.f32 %v1030, %v1028
        %v1032 = vxor.u32 %v1031, 2147483648
        %v1033 = vsel %vm950, %v1032, %v1031
        %v1034 = vsub.s32 4, %v1010
        %v1035 = vsel %vm950, %v1034, %v1010
        %v1036 = vsel %vm949, %v416, %v1033
        %v1037 = vsel %vm949, 0, %v1035
        %v1038 = vcosq.f32.pop %v1036
        %v1039 = vsinq.f32.pop %v1036
        %vm1040 = vweird.f32 %v416
        %v1041 = vand.u32 %v1037, 3
        %vm1042 = vcmp.lt.s32.totalorder %v1041, 2
        %vm1043 = vcmp.eq.s32.totalorder %v1041, 0
        %v1044 = vxor.u32 %v1039, 2147483648
        %v1045 = vsel %vm1043, %v1038, %v1044
        %vm1046 = vcmp.eq.s32.totalorder %v1041, 2
        %v1047 = vxor.u32 %v1038, 2147483648
        %v1048 = vsel %vm1046, %v1047, %v1039
        %v1049 = vsel %vm1042, %v1045, %v1048
        %v1050 = vsel %vm1040, nan, %v1049
        %v1051 = vand.u32 2147483647, %v421
        %vm1052 = vcmp.le.f32.partialorder %v1051, 0.7853982
        %vm1053 = vcmp.lt.s32.totalorder %v421, 0
        %v1054 = vand.u32 %v421, 2139095040
        %v1055 = vshrl.u32 %v1054, 23
        %v1056 = vsub.s32 %v1055, 127
        %v1057 = vand.u32 2147483647, %v421
        %v1058 = vand.u32 %v1057, 8388607
        %v1059 = vor.u32 %v1058, 8388608
        %v1060 = vsub.s32 0, %v1059
        %v1061 = vadd.s32 %v1056, 1
        %vm1062 = vcmp.gt.s32.totalorder %v1061, 0
        %v1063 = vsel %vm1062, %v1061, 0
        %v1064 = vshrl.u32 %v1063, 5
        %v1065 = vand.u32 %v1063, 31
        %v1066 = vsub.s32 32, %v1065
        %v1067 = vshrl.u32 683565275, %v1066
        %v1068 = vshll.u32 683565275, %v1065
        %v1069 = vshrl.u32 2475754826, %v1066
        %v1070 = vor.u32 %v1068, %v1069
        %v1071 = vshll.u32 2475754826, %v1065
        %v1072 = vshrl.u32 2131351028, %v1066
        %v1073 = vor.u32 %v1071, %v1072
        %v1074 = vshll.u32 2131351028, %v1065
        %v1075 = vshrl.u32 2102212464, %v1066
        %v1076 = vor.u32 %v1074, %v1075
        %v1077 = vshll.u32 2102212464, %v1065
        %v1078 = vshrl.u32 920167782, %v1066
        %v1079 = vor.u32 %v1077, %v1078
        %v1080 = vshll.u32 920167782, %v1065
        %v1081 = vshrl.u32 1326507024, %v1066
        %v1082 = vor.u32 %v1080, %v1081
        %vm1083 = vcmp.lt.s32.totalorder %v1064, 1
        %vm1084 = vcmp.lt.s32.totalorder %v1064, 2
        %vm1085 = vcmp.lt.s32.totalorder %v1064, 3
        %vm1086 = vcmp.lt.s32.totalorder %v1064, 4
        %v1087 = vsel %vm1083, %v1067, %v1070
        %v1088 = vsel %vm1086, %v1076, 2102212464
        %v1089 = vsel %vm1085, %v1073, %v1088
        %v1090 = vsel %vm1084, %v1087, %v1089
        %v1091 = vsel %vm1083, %v1070, %v1073
        %v1092 = vsel %vm1086, %v1079, 920167782
        %v1093 = vsel %vm1085, %v1076, %v1092
        %v1094 = vsel %vm1084, %v1091, %v1093
        %v1095 = vsel %vm1083, %v1073, %v1076
        %v1096 = vsel %vm1086, %v1082, 1326507024
        %v1097 = vsel %vm1085, %v1079, %v1096
        %v1098 = vsel %vm1084, %v1095, %v1097
        %v1099 = vshll.u32 %v1059, 8
        %v1100 = vmul.u32.u64.compose %v1099, %v1098
        %v1101 = vextract.low.u32 %v1100
        %v1102 = vextract.high.u32 %v1100
        %v1103 = vmul.u32.u64.compose %v1099, %v1094
        %v1104 = vextract.low.u32 %v1103
        %v1105 = vextract.high.u32 %v1103
        %v1106 = vmul.u32 %v1099, %v1090
        %v1107 = vadd.s32 %v1102, %v1104
        %vm1108 = vc.u32 %v1102, %v1104
        %v1109 = vadd.s32 %v1105, 1
        %v1110 = vsel %vm1108, %v1109, %v1105
        %v1111 = vadd.s32 %v1106, %v1110
        %v1112 = vadd.s32 %v1111, 536870912
        %v1113 = vshrl.u32 %v1112, 30
        %v1114 = vshll.u32 %v1113, 30
        %v1115 = vsub.s32 %v1111, %v1114
        %vm1116 = vcmp.lt.s32.totalorder %v1115, 0
        %v1117 = vsub.s32 0, %v1115
        %v1118 = vsel %vm1116, %v1117, %v1115
        %v1119 = vclz %v1118
        %v1120 = vsub.s32 %v1119, 2
        %vm1121 = vcmp.gt.s32.totalorder 0, %v1120
        %v1122 = vsel %vm1121, 0, %v1120
        %v1123 = vsub.s32 32, %v1122
        %v1124 = vshll.u32 %v1115, %v1122
        %v1125 = vshrl.u32 %v1107, %v1123
        %v1126 = vor.u32 %v1124, %v1125
        %v1127 = vsub.s32 4294967266, %v1122
        %v1128 = vadd.s32 %v1127, 127
        %v1129 = vshll.u32 %v1128, 23
        %v1130 = vor.u32 4788187, %v1129
        %v1131 = vand.u32 2147483647, %v1130
        %v1133 = vcvt.s32.f32 %v1126
        %v1134 = vmul.f32 %v1133, %v1131
        %v1135 = vxor.u32 %v1134, 2147483648
        %v1136 = vsel %vm1053, %v1135, %v1134
        %v1137 = vsub.s32 4, %v1113
        %v1138 = vsel %vm1053, %v1137, %v1113
        %v1139 = vsel %vm1052, %v421, %v1136
        %v1140 = vsel %vm1052, 0, %v1138
        %v1141 = vcosq.f32.pop %v1139
        %v1142 = vsinq.f32.pop %v1139
        %vm1143 = vweird.f32 %v421
        %v1144 = vand.u32 %v1140, 3
        %vm1145 = vcmp.lt.s32.totalorder %v1144, 2
        %vm1146 = vcmp.eq.s32.totalorder %v1144, 0
        %v1147 = vxor.u32 %v1142, 2147483648
        %v1148 = vsel %vm1146, %v1141, %v1147
        %vm1149 = vcmp.eq.s32.totalorder %v1144, 2
        %v1150 = vxor.u32 %v1141, 2147483648
        %v1151 = vsel %vm1149, %v1150, %v1142
        %v1152 = vsel %vm1145, %v1148, %v1151
        %v1153 = vsel %vm1143, nan, %v1152
        %v1154 = vand.u32 2147483647, %v426
        %vm1155 = vcmp.le.f32.partialorder %v1154, 0.7853982
        %vm1156 = vcmp.lt.s32.totalorder %v426, 0
        %v1157 = vand.u32 %v426, 2139095040
        %v1158 = vshrl.u32 %v1157, 23
        %v1159 = vsub.s32 %v1158, 127
        %v1160 = vand.u32 2147483647, %v426
        %v1161 = vand.u32 %v1160, 8388607
        %v1162 = vor.u32 %v1161, 8388608
        %v1163 = vsub.s32 0, %v1162
        %v1164 = vadd.s32 %v1159, 1
        %vm1165 = vcmp.gt.s32.totalorder %v1164, 0
        %v1166 = vsel %vm1165, %v1164, 0
        %v1167 = vshrl.u32 %v1166, 5
        %v1168 = vand.u32 %v1166, 31
        %v1169 = vsub.s32 32, %v1168
        %v1170 = vshrl.u32 683565275, %v1169
        %v1171 = vshll.u32 683565275, %v1168
        %v1172 = vshrl.u32 2475754826, %v1169
        %v1173 = vor.u32 %v1171, %v1172
        %v1174 = vshll.u32 2475754826, %v1168
        %v1175 = vshrl.u32 2131351028, %v1169
        %v1176 = vor.u32 %v1174, %v1175
        %v1177 = vshll.u32 2131351028, %v1168
        %v1178 = vshrl.u32 2102212464, %v1169
        %v1179 = vor.u32 %v1177, %v1178
        %v1180 = vshll.u32 2102212464, %v1168
        %v1181 = vshrl.u32 920167782, %v1169
        %v1182 = vor.u32 %v1180, %v1181
        %v1183 = vshll.u32 920167782, %v1168
        %v1184 = vshrl.u32 1326507024, %v1169
        %v1185 = vor.u32 %v1183, %v1184
        %vm1186 = vcmp.lt.s32.totalorder %v1167, 1
        %vm1187 = vcmp.lt.s32.totalorder %v1167, 2
        %vm1188 = vcmp.lt.s32.totalorder %v1167, 3
        %vm1189 = vcmp.lt.s32.totalorder %v1167, 4
        %v1190 = vsel %vm1186, %v1170, %v1173
        %v1191 = vsel %vm1189, %v1179, 2102212464
        %v1192 = vsel %vm1188, %v1176, %v1191
        %v1193 = vsel %vm1187, %v1190, %v1192
        %v1194 = vsel %vm1186, %v1173, %v1176
        %v1195 = vsel %vm1189, %v1182, 920167782
        %v1196 = vsel %vm1188, %v1179, %v1195
        %v1197 = vsel %vm1187, %v1194, %v1196
        %v1198 = vsel %vm1186, %v1176, %v1179
        %v1199 = vsel %vm1189, %v1185, 1326507024
        %v1200 = vsel %vm1188, %v1182, %v1199
        %v1201 = vsel %vm1187, %v1198, %v1200
        %v1202 = vshll.u32 %v1162, 8
        %v1203 = vmul.u32.u64.compose %v1202, %v1201
        %v1204 = vextract.low.u32 %v1203
        %v1205 = vextract.high.u32 %v1203
        %v1206 = vmul.u32.u64.compose %v1202, %v1197
        %v1207 = vextract.low.u32 %v1206
        %v1208 = vextract.high.u32 %v1206
        %v1209 = vmul.u32 %v1202, %v1193
        %v1210 = vadd.s32 %v1205, %v1207
        %vm1211 = vc.u32 %v1205, %v1207
        %v1212 = vadd.s32 %v1208, 1
        %v1213 = vsel %vm1211, %v1212, %v1208
        %v1214 = vadd.s32 %v1209, %v1213
        %v1215 = vadd.s32 %v1214, 536870912
        %v1216 = vshrl.u32 %v1215, 30
        %v1217 = vshll.u32 %v1216, 30
        %v1218 = vsub.s32 %v1214, %v1217
        %vm1219 = vcmp.lt.s32.totalorder %v1218, 0
        %v1220 = vsub.s32 0, %v1218
        %v1221 = vsel %vm1219, %v1220, %v1218
        %v1222 = vclz %v1221
        %v1223 = vsub.s32 %v1222, 2
        %vm1224 = vcmp.gt.s32.totalorder 0, %v1223
        %v1225 = vsel %vm1224, 0, %v1223
        %v1226 = vsub.s32 32, %v1225
        %v1227 = vshll.u32 %v1218, %v1225
        %v1228 = vshrl.u32 %v1210, %v1226
        %v1229 = vor.u32 %v1227, %v1228
        %v1230 = vsub.s32 4294967266, %v1225
        %v1231 = vadd.s32 %v1230, 127
        %v1232 = vshll.u32 %v1231, 23
        %v1233 = vor.u32 4788187, %v1232
        %v1234 = vand.u32 2147483647, %v1233
        %v1236 = vcvt.s32.f32 %v1229
        %v1237 = vmul.f32 %v1236, %v1234
        %v1238 = vxor.u32 %v1237, 2147483648
        %v1239 = vsel %vm1156, %v1238, %v1237
        %v1240 = vsub.s32 4, %v1216
        %v1241 = vsel %vm1156, %v1240, %v1216
        %v1242 = vsel %vm1155, %v426, %v1239
        %v1243 = vsel %vm1155, 0, %v1241
        %v1244 = vcosq.f32.pop %v1242
        %v1245 = vsinq.f32.pop %v1242
        %vm1246 = vweird.f32 %v426
        %v1247 = vand.u32 %v1243, 3
        %vm1248 = vcmp.lt.s32.totalorder %v1247, 2
        %vm1249 = vcmp.eq.s32.totalorder %v1247, 0
        %v1250 = vxor.u32 %v1245, 2147483648
        %v1251 = vsel %vm1249, %v1244, %v1250
        %vm1252 = vcmp.eq.s32.totalorder %v1247, 2
        %v1253 = vxor.u32 %v1244, 2147483648
        %v1254 = vsel %vm1252, %v1253, %v1245
        %v1255 = vsel %vm1248, %v1251, %v1254
        %v1256 = vsel %vm1246, nan, %v1255
        %v1257 = vld [vmem:[%s3] sm:$0xff]
        %v1258 = vld [vmem:[%s3 + $0x8] sm:$0xff]
        %v1259 = vld [vmem:[%s3 + $0x10] sm:$0xff]
        %v1260 = vld [vmem:[%s3 + $0x18] sm:$0xff]
        %1262 = vset.pattern.permute.xlu0 0
        %1263 = vperm.xlu0 %1262, %v1257
        %v1264 = vpop.permute.xlu0 %1263
        %1267 = vset.pattern.permute.xlu0 0
        %1268 = vperm.xlu0 %1267, %v1258
        %v1269 = vpop.permute.xlu0 %1268
        %1272 = vset.pattern.permute.xlu0 0
        %1273 = vperm.xlu0 %1272, %v1259
        %v1274 = vpop.permute.xlu0 %1273
        %1277 = vset.pattern.permute.xlu0 0
        %1278 = vperm.xlu0 %1277, %v1260
        %v1279 = vpop.permute.xlu0 %1278
        %v1281 = vmul.f32 %v532, %v1264
        %v1282 = vmul.f32 %v636, %v1269
        %v1283 = vmul.f32 %v740, %v1274
        %v1284 = vmul.f32 %v844, %v1279
        %1285 = vset.pattern.permute.xlu0 1
        %1286 = vperm.xlu0 %1285, %v1257
        %v1287 = vpop.permute.xlu0 %1286
        %1289 = vset.pattern.permute.xlu0 1
        %1290 = vperm.xlu0 %1289, %v1258
        %v1291 = vpop.permute.xlu0 %1290
        %1293 = vset.pattern.permute.xlu0 1
        %1294 = vperm.xlu0 %1293, %v1259
        %v1295 = vpop.permute.xlu0 %1294
        %1297 = vset.pattern.permute.xlu0 1
        %1298 = vperm.xlu0 %1297, %v1260
        %v1299 = vpop.permute.xlu0 %1298
        %v1301 = vmul.f32 %v947, %v1287
        %v1302 = vmul.f32 %v1050, %v1291
        %v1303 = vmul.f32 %v1153, %v1295
        %v1304 = vmul.f32 %v1256, %v1299
        %1305 = vset.pattern.permute.xlu0 2
        %1306 = vperm.xlu0 %1305, %v1257
        %v1307 = vpop.permute.xlu0 %1306
        %1309 = vset.pattern.permute.xlu0 2
        %1310 = vperm.xlu0 %1309, %v1258
        %v1311 = vpop.permute.xlu0 %1310
        %1313 = vset.pattern.permute.xlu0 2
        %1314 = vperm.xlu0 %1313, %v1259
        %v1315 = vpop.permute.xlu0 %1314
        %1317 = vset.pattern.permute.xlu0 2
        %1318 = vperm.xlu0 %1317, %v1260
        %v1319 = vpop.permute.xlu0 %1318
        %v1321 = vmul.f32 %v532, %v1307
        %v1322 = vmul.f32 %v636, %v1311
        %v1323 = vmul.f32 %v740, %v1315
        %v1324 = vmul.f32 %v844, %v1319
        %1325 = vset.pattern.permute.xlu0 3
        %1326 = vperm.xlu0 %1325, %v1257
        %v1327 = vpop.permute.xlu0 %1326
        %1329 = vset.pattern.permute.xlu0 3
        %1330 = vperm.xlu0 %1329, %v1258
        %v1331 = vpop.permute.xlu0 %1330
        %1333 = vset.pattern.permute.xlu0 3
        %1334 = vperm.xlu0 %1333, %v1259
        %v1335 = vpop.permute.xlu0 %1334
        %1337 = vset.pattern.permute.xlu0 3
        %1338 = vperm.xlu0 %1337, %v1260
        %v1339 = vpop.permute.xlu0 %1338
        %v1341 = vmul.f32 %v947, %v1327
        %v1342 = vmul.f32 %v1050, %v1331
        %v1343 = vmul.f32 %v1153, %v1335
        %v1344 = vmul.f32 %v1256, %v1339
        %v1345 = vsub.f32 %v1281, %v1301
        %v1346 = vsub.f32 %v1282, %v1302
        %v1347 = vsub.f32 %v1283, %v1303
        %v1348 = vsub.f32 %v1284, %v1304
        %1349 = vst [vmem:[#allocation2] sm:$0xff] %v1345
        %1350 = vst [vmem:[#allocation2 + $0x20] sm:$0xff] %v1346
        %1351 = vst [vmem:[#allocation2 + $0x40] sm:$0xff] %v1347
        %1352 = vst [vmem:[#allocation2 + $0x60] sm:$0xff] %v1348
        %v1353 = vadd.f32 %v1281, %v1301
        %v1354 = vadd.f32 %v1282, %v1302
        %v1355 = vadd.f32 %v1283, %v1303
        %v1356 = vadd.f32 %v1284, %v1304
        %1357 = vst [vmem:[#allocation2 + $0x8] sm:$0xff] %v1353
        %1358 = vst [vmem:[#allocation2 + $0x28] sm:$0xff] %v1354
        %1359 = vst [vmem:[#allocation2 + $0x48] sm:$0xff] %v1355
        %1360 = vst [vmem:[#allocation2 + $0x68] sm:$0xff] %v1356
        %v1361 = vsub.f32 %v1321, %v1341
        %v1362 = vsub.f32 %v1322, %v1342
        %v1363 = vsub.f32 %v1323, %v1343
        %v1364 = vsub.f32 %v1324, %v1344
        %1365 = vst [vmem:[#allocation2 + $0x10] sm:$0xff] %v1361
        %1366 = vst [vmem:[#allocation2 + $0x30] sm:$0xff] %v1362
        %1367 = vst [vmem:[#allocation2 + $0x50] sm:$0xff] %v1363
        %1368 = vst [vmem:[#allocation2 + $0x70] sm:$0xff] %v1364
        %v1369 = vadd.f32 %v1321, %v1341
        %v1370 = vadd.f32 %v1322, %v1342
        %v1371 = vadd.f32 %v1323, %v1343
        %v1372 = vadd.f32 %v1324, %v1344
        %1373 = vst [vmem:[#allocation2 + $0x18] sm:$0xff] %v1369
        %1374 = vst [vmem:[#allocation2 + $0x38] sm:$0xff] %v1370
        %1375 = vst [vmem:[#allocation2 + $0x58] sm:$0xff] %v1371
        %1376 = vst [vmem:[#allocation2 + $0x78] sm:$0xff] %v1372
        %v1377 = vld [vmem:[%s4] sm:$0xff]
        %v1378 = vld [vmem:[%s4 + $0x8] sm:$0xff]
        %v1379 = vld [vmem:[%s4 + $0x10] sm:$0xff]
        %v1380 = vld [vmem:[%s4 + $0x18] sm:$0xff]
        %v1381 = vld [vmem:[#allocation2] sm:$0xff]
        %v1382 = vld [vmem:[#allocation2 + $0x8] sm:$0xff]
        %v1383 = vld [vmem:[#allocation2 + $0x10] sm:$0xff]
        %v1384 = vld [vmem:[#allocation2 + $0x18] sm:$0xff]
        %v1385 = vld [vmem:[#allocation2 + $0x20] sm:$0xff]
        %v1386 = vld [vmem:[#allocation2 + $0x28] sm:$0xff]
        %v1387 = vld [vmem:[#allocation2 + $0x30] sm:$0xff]
        %v1388 = vld [vmem:[#allocation2 + $0x38] sm:$0xff]
        %v1389 = vld [vmem:[#allocation2 + $0x40] sm:$0xff]
        %v1390 = vld [vmem:[#allocation2 + $0x48] sm:$0xff]
        %v1391 = vld [vmem:[#allocation2 + $0x50] sm:$0xff]
        %v1392 = vld [vmem:[#allocation2 + $0x58] sm:$0xff]
        %v1393 = vld [vmem:[#allocation2 + $0x60] sm:$0xff]
        %v1394 = vld [vmem:[#allocation2 + $0x68] sm:$0xff]
        %v1395 = vld [vmem:[#allocation2 + $0x70] sm:$0xff]
        %v1396 = vld [vmem:[#allocation2 + $0x78] sm:$0xff]
        %v1397 = vld [vmem:[%s5] sm:$0xff]
        %v1398 = vld [vmem:[%s5 + $0x8] sm:$0xff]
        %v1399 = vld [vmem:[%s5 + $0x10] sm:$0xff]
        %v1400 = vld [vmem:[%s5 + $0x18] sm:$0xff]
        %1402 = vset.pattern.permute.xlu0 0
        %1403 = vperm.xlu0 %1402, %v1397
        %v1404 = vpop.permute.xlu0 %1403
        %1407 = vset.pattern.permute.xlu0 0
        %1408 = vperm.xlu0 %1407, %v1398
        %v1409 = vpop.permute.xlu0 %1408
        %1412 = vset.pattern.permute.xlu0 0
        %1413 = vperm.xlu0 %1412, %v1399
        %v1414 = vpop.permute.xlu0 %1413
        %1417 = vset.pattern.permute.xlu0 0
        %1418 = vperm.xlu0 %1417, %v1400
        %v1419 = vpop.permute.xlu0 %1418
        %vm1421 = vcmask 261120
        %v1423 = vsel %vm1421, %v1377, 0
        %v1426 = vsel %vm1421, %v1378, 0
        %v1429 = vsel %vm1421, %v1379, 0
        %v1432 = vsel %vm1421, %v1380, 0
        %1434 = vmatprep.subr.mxu0 %v1382
        %1435 = vmatpush1.msra.mxu0 %v1381
        %1436 = vmatprep.subr.mxu0 %v1386
        %1437 = vmatpush1.msra.mxu0 %v1385
        %1438 = vmatprep.subr.mxu0 %v1390
        %1439 = vmatpush1.msra.mxu0 %v1389
        %1440 = vmatprep.subr.mxu0 %v1394
        %1441 = vmatpush1.msra.mxu0 %v1393
        %1442 = vmatprep.subr.mxu0 0.0
        %1443 = vmatpush1.msra.mxu0 0.0
        %1444 = vmatprep.subr.mxu0 0.0
        %1445 = vmatpush1.msra.mxu0 0.0
        %1446 = vmatprep.subr.mxu0 0.0
        %1447 = vmatpush1.msra.mxu0 0.0
        %1448 = vmatprep.subr.mxu0 0.0
        %1449 = vmatpush1.msra.mxu0 0.0
        %1450 = vmatprep.subr.mxu0 0.0
        %1451 = vmatpush1.msra.mxu0 0.0
        %1452 = vmatprep.subr.mxu0 0.0
        %1453 = vmatpush1.msra.mxu0 0.0
        %1454 = vmatprep.subr.mxu0 0.0
        %1455 = vmatpush1.msra.mxu0 0.0
        %1456 = vmatprep.subr.mxu0 0.0
        %1457 = vmatpush1.msra.mxu0 0.0
        %1458 = vmatprep.subr.mxu0 0.0
        %1459 = vmatpush1.msra.mxu0 0.0
        %1460 = vmatprep.subr.mxu0 0.0
        %1461 = vmatpush1.msra.mxu0 0.0
        %1462 = vmatprep.subr.mxu0 0.0
        %1463 = vmatpush1.msra.mxu0 0.0
        %1464 = vmatprep.subr.mxu0 0.0
        %1465 = vmatpush1.msra.mxu0 0.0
        %1466 = vmatprep.subr.mxu0 0.0
        %1467 = vmatpush1.msra.mxu0 0.0
        %1468 = vmatprep.subr.mxu0 0.0
        %1469 = vmatpush1.msra.mxu0 0.0
        %1470 = vmatprep.subr.mxu0 0.0
        %1471 = vmatpush1.msra.mxu0 0.0
        %1472 = vmatprep.subr.mxu0 0.0
        %1473 = vmatpush1.msra.mxu0 0.0
        %1474 = vmatprep.subr.mxu0 0.0
        %1475 = vmatpush1.msra.mxu0 0.0
        %1476 = vmatprep.subr.mxu0 0.0
        %1477 = vmatpush1.msra.mxu0 0.0
        %1478 = vmatprep.subr.mxu0 0.0
        %1479 = vmatpush1.msra.mxu0 0.0
        %1480 = vmatprep.subr.mxu0 0.0
        %1481 = vmatpush1.msra.mxu0 0.0
        %1482 = vmatprep.subr.mxu0 0.0
        %1483 = vmatpush1.msra.mxu0 0.0
        %1484 = vmatprep.subr.mxu0 0.0
        %1485 = vmatpush1.msra.mxu0 0.0
        %1486 = vmatprep.subr.mxu0 0.0
        %1487 = vmatpush1.msra.mxu0 0.0
        %1488 = vmatprep.subr.mxu0 0.0
        %1489 = vmatpush1.msra.mxu0 0.0
        %1490 = vmatprep.subr.mxu0 0.0
        %1491 = vmatpush1.msra.mxu0 0.0
        %1492 = vmatprep.subr.mxu0 0.0
        %1493 = vmatpush1.msra.mxu0 0.0
        %1494 = vmatprep.subr.mxu0 0.0
        %1495 = vmatpush1.msra.mxu0 0.0
        %1496 = vmatprep.subr.mxu0 0.0
        %1497 = vmatpush1.msra.mxu0 0.0
        %1498 = vmatprep.mubr.f32.mxu0 0.0
        %1499 = vmatmul.mubr.f32.gmra.mrb[0].mxu0 %v1423
        %v1500 = vpop.f32.mrb[0].mxu0
        %v1501 = vadd.f32 %v1404, %v1500
        %v1502 = vpop.f32.mrb[0].mxu0
        %v1503 = vadd.f32 %v1404, %v1502
        %1504 = vmatprep.mubr.f32.mxu0 0.0
        %1505 = vmatmul.mubr.f32.gmra.mrb[0].mxu0 %v1426
        %v1506 = vpop.f32.mrb[0].mxu0
        %v1507 = vadd.f32 %v1409, %v1506
        %v1508 = vpop.f32.mrb[0].mxu0
        %v1509 = vadd.f32 %v1409, %v1508
        %1510 = vmatprep.mubr.f32.mxu0 0.0
        %1511 = vmatmul.mubr.f32.gmra.mrb[0].mxu0 %v1429
        %v1512 = vpop.f32.mrb[0].mxu0
        %v1513 = vadd.f32 %v1414, %v1512
        %v1514 = vpop.f32.mrb[0].mxu0
        %v1515 = vadd.f32 %v1414, %v1514
        %1516 = vmatprep.mubr.f32.mxu0 0.0
        %1517 = vmatmul.mubr.f32.gmra.mrb[0].mxu0 %v1432
        %v1518 = vpop.f32.mrb[0].mxu0
        %v1519 = vadd.f32 %v1419, %v1518
        %v1520 = vpop.f32.mrb[0].mxu0
        %v1521 = vadd.f32 %v1419, %v1520
        %1522 = vdwg.mxu0
        %1523 = vmatprep.subr.mxu0 %v1384
        %1524 = vmatpush1.msra.mxu0 %v1383
        %1525 = vmatprep.subr.mxu0 %v1388
        %1526 = vmatpush1.msra.mxu0 %v1387
        %1527 = vmatprep.subr.mxu0 %v1392
        %1528 = vmatpush1.msra.mxu0 %v1391
        %1529 = vmatprep.subr.mxu0 %v1396
        %1530 = vmatpush1.msra.mxu0 %v1395
        %1531 = vmatprep.subr.mxu0 0.0
        %1532 = vmatpush1.msra.mxu0 0.0
        %1533 = vmatprep.subr.mxu0 0.0
        %1534 = vmatpush1.msra.mxu0 0.0
        %1535 = vmatprep.subr.mxu0 0.0
        %1536 = vmatpush1.msra.mxu0 0.0
        %1537 = vmatprep.subr.mxu0 0.0
        %1538 = vmatpush1.msra.mxu0 0.0
        %1539 = vmatprep.subr.mxu0 0.0
        %1540 = vmatpush1.msra.mxu0 0.0
        %1541 = vmatprep.subr.mxu0 0.0
        %1542 = vmatpush1.msra.mxu0 0.0
        %1543 = vmatprep.subr.mxu0 0.0
        %1544 = vmatpush1.msra.mxu0 0.0
        %1545 = vmatprep.subr.mxu0 0.0
        %1546 = vmatpush1.msra.mxu0 0.0
        %1547 = vmatprep.subr.mxu0 0.0
        %1548 = vmatpush1.msra.mxu0 0.0
        %1549 = vmatprep.subr.mxu0 0.0
        %1550 = vmatpush1.msra.mxu0 0.0
        %1551 = vmatprep.subr.mxu0 0.0
        %1552 = vmatpush1.msra.mxu0 0.0
        %1553 = vmatprep.subr.mxu0 0.0
        %1554 = vmatpush1.msra.mxu0 0.0
        %1555 = vmatprep.subr.mxu0 0.0
        %1556 = vmatpush1.msra.mxu0 0.0
        %1557 = vmatprep.subr.mxu0 0.0
        %1558 = vmatpush1.msra.mxu0 0.0
        %1559 = vmatprep.subr.mxu0 0.0
        %1560 = vmatpush1.msra.mxu0 0.0
        %1561 = vmatprep.subr.mxu0 0.0
        %1562 = vmatpush1.msra.mxu0 0.0
        %1563 = vmatprep.subr.mxu0 0.0
        %1564 = vmatpush1.msra.mxu0 0.0
        %1565 = vmatprep.subr.mxu0 0.0
        %1566 = vmatpush1.msra.mxu0 0.0
        %1567 = vmatprep.subr.mxu0 0.0
        %1568 = vmatpush1.msra.mxu0 0.0
        %1569 = vmatprep.subr.mxu0 0.0
        %1570 = vmatpush1.msra.mxu0 0.0
        %1571 = vmatprep.subr.mxu0 0.0
        %1572 = vmatpush1.msra.mxu0 0.0
        %1573 = vmatprep.subr.mxu0 0.0
        %1574 = vmatpush1.msra.mxu0 0.0
        %1575 = vmatprep.subr.mxu0 0.0
        %1576 = vmatpush1.msra.mxu0 0.0
        %1577 = vmatprep.subr.mxu0 0.0
        %1578 = vmatpush1.msra.mxu0 0.0
        %1579 = vmatprep.subr.mxu0 0.0
        %1580 = vmatpush1.msra.mxu0 0.0
        %1581 = vmatprep.subr.mxu0 0.0
        %1582 = vmatpush1.msra.mxu0 0.0
        %1583 = vmatprep.subr.mxu0 0.0
        %1584 = vmatpush1.msra.mxu0 0.0
        %1585 = vmatprep.subr.mxu0 0.0
        %1586 = vmatpush1.msra.mxu0 0.0
        %1587 = vmatprep.mubr.f32.mxu0 0.0
        %1588 = vmatmul.mubr.f32.gmra.mrb[0].mxu0 %v1423
        %v1589 = vpop.f32.mrb[0].mxu0
        %v1590 = vadd.f32 %v1404, %v1589
        %v1591 = vpop.f32.mrb[0].mxu0
        %v1592 = vadd.f32 %v1404, %v1591
        %1593 = vmatprep.mubr.f32.mxu0 0.0
        %1594 = vmatmul.mubr.f32.gmra.mrb[0].mxu0 %v1426
        %v1595 = vpop.f32.mrb[0].mxu0
        %v1596 = vadd.f32 %v1409, %v1595
        %v1597 = vpop.f32.mrb[0].mxu0
        %v1598 = vadd.f32 %v1409, %v1597
        %1599 = vmatprep.mubr.f32.mxu0 0.0
        %1600 = vmatmul.mubr.f32.gmra.mrb[0].mxu0 %v1429
        %v1601 = vpop.f32.mrb[0].mxu0
        %v1602 = vadd.f32 %v1414, %v1601
        %v1603 = vpop.f32.mrb[0].mxu0
        %v1604 = vadd.f32 %v1414, %v1603
        %1605 = vmatprep.mubr.f32.mxu0 0.0
        %1606 = vmatmul.mubr.f32.gmra.mrb[0].mxu0 %v1432
        %v1607 = vpop.f32.mrb[0].mxu0
        %v1608 = vadd.f32 %v1419, %v1607
        %v1609 = vpop.f32.mrb[0].mxu0
        %v1610 = vadd.f32 %v1419, %v1609
        %1611 = vdwg.mxu0
        %v1612 = vtanh.pop %v1501
        %v1613 = vtanh.pop %v1503
        %v1614 = vtanh.pop %v1590
        %v1615 = vtanh.pop %v1592
        %v1616 = vtanh.pop %v1507
        %v1617 = vtanh.pop %v1509
        %v1618 = vtanh.pop %v1596
        %v1619 = vtanh.pop %v1598
        %v1620 = vtanh.pop %v1513
        %v1621 = vtanh.pop %v1515
        %v1622 = vtanh.pop %v1602
        %v1623 = vtanh.pop %v1604
        %v1624 = vtanh.pop %v1519
        %v1625 = vtanh.pop %v1521
        %v1626 = vtanh.pop %v1608
        %v1627 = vtanh.pop %v1610
        %v1628 = vadd.f32 %v1612, %v1613
        %v1629 = vadd.f32 %v1616, %v1617
        %v1630 = vadd.f32 %v1620, %v1621
        %v1631 = vadd.f32 %v1624, %v1625
        %v1632 = vmul.f32 %v1628, 1600.0
        %v1633 = vmul.f32 %v1629, 1600.0
        %v1634 = vmul.f32 %v1630, 1600.0
        %v1635 = vmul.f32 %v1631, 1600.0
        %v1636 = vadd.f32 %v1614, %v1615
        %v1637 = vadd.f32 %v1618, %v1619
        %v1638 = vadd.f32 %v1622, %v1623
        %v1639 = vadd.f32 %v1626, %v1627
        %v1640 = vmul.f32 %v1636, 1600.0
        %v1641 = vmul.f32 %v1637, 1600.0
        %v1642 = vmul.f32 %v1638, 1600.0
        %v1643 = vmul.f32 %v1639, 1600.0
        %v1644 = vadd.f32 %v1632, %v1640
        %v1645 = vadd.f32 %v1633, %v1641
        %v1646 = vadd.f32 %v1634, %v1642
        %v1647 = vadd.f32 %v1635, %v1643
        %v1648 = vld [vmem:[%s6] sm:$0x3]
        %v1649 = vld [vmem:[%s7] sm:$0x3]
        %1651 = vset.pattern.permute.xlu0 0
        %1652 = vperm.xlu0 %1651, %v1649
        %v1653 = vpop.permute.xlu0 %1652
        %v1656 = vsel %vm1421, %v1648, 0
        %1658 = vmatprep.subr.mxu0 0.0
        %1659 = vmatpush1.msra.mxu0 %v1644
        %1660 = vmatprep.subr.mxu0 0.0
        %1661 = vmatpush1.msra.mxu0 %v1645
        %1662 = vmatprep.subr.mxu0 0.0
        %1663 = vmatpush1.msra.mxu0 %v1646
        %1664 = vmatprep.subr.mxu0 0.0
        %1665 = vmatpush1.msra.mxu0 %v1647
        %1666 = vmatprep.subr.mxu0 0.0
        %1667 = vmatpush1.msra.mxu0 0.0
        %1668 = vmatprep.subr.mxu0 0.0
        %1669 = vmatpush1.msra.mxu0 0.0
        %1670 = vmatprep.subr.mxu0 0.0
        %1671 = vmatpush1.msra.mxu0 0.0
        %1672 = vmatprep.subr.mxu0 0.0
        %1673 = vmatpush1.msra.mxu0 0.0
        %1674 = vmatprep.subr.mxu0 0.0
        %1675 = vmatpush1.msra.mxu0 0.0
        %1676 = vmatprep.subr.mxu0 0.0
        %1677 = vmatpush1.msra.mxu0 0.0
        %1678 = vmatprep.subr.mxu0 0.0
        %1679 = vmatpush1.msra.mxu0 0.0
        %1680 = vmatprep.subr.mxu0 0.0
        %1681 = vmatpush1.msra.mxu0 0.0
        %1682 = vmatprep.subr.mxu0 0.0
        %1683 = vmatpush1.msra.mxu0 0.0
        %1684 = vmatprep.subr.mxu0 0.0
        %1685 = vmatpush1.msra.mxu0 0.0
        %1686 = vmatprep.subr.mxu0 0.0
        %1687 = vmatpush1.msra.mxu0 0.0
        %1688 = vmatprep.subr.mxu0 0.0
        %1689 = vmatpush1.msra.mxu0 0.0
        %1690 = vmatprep.subr.mxu0 0.0
        %1691 = vmatpush1.msra.mxu0 0.0
        %1692 = vmatprep.subr.mxu0 0.0
        %1693 = vmatpush1.msra.mxu0 0.0
        %1694 = vmatprep.subr.mxu0 0.0
        %1695 = vmatpush1.msra.mxu0 0.0
        %1696 = vmatprep.subr.mxu0 0.0
        %1697 = vmatpush1.msra.mxu0 0.0
        %1698 = vmatprep.subr.mxu0 0.0
        %1699 = vmatpush1.msra.mxu0 0.0
        %1700 = vmatprep.subr.mxu0 0.0
        %1701 = vmatpush1.msra.mxu0 0.0
        %1702 = vmatprep.subr.mxu0 0.0
        %1703 = vmatpush1.msra.mxu0 0.0
        %1704 = vmatprep.subr.mxu0 0.0
        %1705 = vmatpush1.msra.mxu0 0.0
        %1706 = vmatprep.subr.mxu0 0.0
        %1707 = vmatpush1.msra.mxu0 0.0
        %1708 = vmatprep.subr.mxu0 0.0
        %1709 = vmatpush1.msra.mxu0 0.0
        %1710 = vmatprep.subr.mxu0 0.0
        %1711 = vmatpush1.msra.mxu0 0.0
        %1712 = vmatprep.subr.mxu0 0.0
        %1713 = vmatpush1.msra.mxu0 0.0
        %1714 = vmatprep.subr.mxu0 0.0
        %1715 = vmatpush1.msra.mxu0 0.0
        %1716 = vmatprep.subr.mxu0 0.0
        %1717 = vmatpush1.msra.mxu0 0.0
        %1718 = vmatprep.subr.mxu0 0.0
        %1719 = vmatpush1.msra.mxu0 0.0
        %1720 = vmatprep.subr.mxu0 0.0
        %1721 = vmatpush1.msra.mxu0 0.0
        %1722 = vmatprep.mubr.f32.mxu0 0.0
        %1723 = vmatmul.mubr.f32.gmra.mrb[0].mxu0 %v1656
        %v1724 = vpop.f32.mrb[0].mxu0
        %v1725 = vadd.f32 %v1653, %v1724
        %v1726 = vpop.f32.mrb[0].mxu0
        %1727 = vdwg.mxu0
        %s1728 = smul.f32 %s317, %s317
        %v1729 = vstv %s1728
        %v1730 = vmul.f32 %v1729, %v321
        %v1731 = vsub.f32 %v1730, 6400.0
        %v1732 = vsub.f32 %v321, %v322
        %v1733 = vmul.f32 %v1729, %v1732
        %v1734 = vlaneseq
        %v1735 = vshrl.u32 %v1734, 7
        %v1736 = vsub.s32 0, %v1735
        %v1737 = vrot.slane %v1731, %v1736
        %v1738 = vmul.f32 %v1737, %v324
        %v1739 = vadd.f32 %v1738, %v1725
        %v1740 = vlaneseq
        %v1741 = vshrl.u32 %v1740, 7
        %v1742 = vsub.s32 0, %v1741
        %v1743 = vrot.slane %v1733, %v1742
        %v1744 = vmul.f32 %v1743, %v323
        %v1745 = vadd.f32 %v1739, %v1744
        %v1746 = vstv %s317
        %v1747 = vrcp.pop %v1746
        %s1748 = vtos %v1747
        %s1749 = smul.f32 2.355, %s1748
        %s1750 = smul.f32 %s1749, %s1749
        %v1751 = vsub.f32 %v320, %v318
        %v1752 = vmul.f32 %v1751, %v1751
        %v1753 = vstv %s1750
        %v1754 = vsub.f32 %v1753, %v1752
        %v1755 = vsub.f32 %v319, 0.025
        %v1756 = vmul.f32 %v1755, %v1755
        %v1757 = vsub.f32 %v1754, %v1756
        %v1758 = vmax.f32 %v1757, 0.0
        %v1759 = vmul.f32 %v1758, 1e+08
        %v1760 = vstv %s317
        %v1761 = vmul.f32 %v1759, %v1760
        %v1762 = vmul.f32 %v1745, %v1745
        %vm1763 = vcmask 1041408
        %v1764 = vsel %vm1763, %v1762, 0.0
        %1765 = vadd.xlane.f32.xlu0 %v1764
        %v1766 = vpop.xlane.xlu0 %1765
        %v1767 = vrot.slane %v1766, 4
        %v1768 = vadd.f32 %v1766, %v1767
        %v1769 = vrot.slane %v1768, 2
        %v1770 = vadd.f32 %v1768, %v1769
        %v1771 = vrot.slane %v1770, 1
        %v1772 = vadd.f32 %v1770, %v1771
        %s1773 = vtos %v1772
        %v1774 = vmul.f32 %v324, %v324
        %v1775 = vlaneseq
        %v1776 = vshrl.u32 %v1775, 7
        %v1777 = vsub.s32 0, %v1776
        %v1778 = vrot.slane %v1761, %v1777
        %v1779 = vmul.f32 %v1778, %v1774
        %v1780 = vsel %vm1763, %v1779, 0.0
        %1781 = vadd.xlane.f32.xlu0 %v1780
        %v1782 = vpop.xlane.xlu0 %1781
        %v1783 = vrot.slane %v1782, 4
        %v1784 = vadd.f32 %v1782, %v1783
        %v1785 = vrot.slane %v1784, 2
        %v1786 = vadd.f32 %v1784, %v1785
        %v1787 = vrot.slane %v1786, 1
        %v1788 = vadd.f32 %v1786, %v1787
        %s1789 = vtos %v1788
        %v1790 = vlaneseq
        %v1791 = vand.u32 %v1790, 127
        %vm1792 = vcmp.eq.s32.totalorder %v1791, 0
        %v1793 = vstv %s1773
        %v1794 = vsel %vm1792, %v1793, 0.0
        %vm1795 = vcmp.eq.s32.totalorder %v1791, 1
        %v1796 = vstv %s1789
        %v1797 = vsel %vm1795, %v1796, 0.0
        %v1798 = vadd.f32 %v1794, %v1797
        %1799 = vst [vmem:[%s316] sm:$0xff] %v1798
        %p1800 = scmp.lt.s32.totalorder %s20, 1
        %s1801 = scalar_select %p1800, %s20, 1
        %s1802 = smul.addr %s1801, 8
        %s1803 = scalar_lea.vmem %s8, %s1802
        // Predicated region
        $region87: #{helmholtz_loss_pde_fd.1} parent=81 // pred_check
          %p1804 = pneg %p190
        $region88: #{helmholtz_loss_pde_fd.1} parent=81 // pred_check_branch
          %1806 = sbr.rel (%p1804) target = $region90
        $region89: #{helmholtz_loss_pde_fd.1} parent=81 // pred_region
          _
        $region90: #{helmholtz_loss_pde_fd.1} parent=81 // pred_fallthru
          _
      $region82: #{helmholtz_loss_pde_fd.1} parent=5 // pred_fallthru
        _
      %p1807 = scmp.le.s32.totalorder 2, %s15
      // Predicated region
      $region91: #{helmholtz_loss_pde_fd.1} parent=5 // pred_check
        %p1808 = pneg %p1807
      $region92: #{helmholtz_loss_pde_fd.1} parent=5 // pred_check_branch
        %1810 = sbr.rel (%p1808) target = $region94
      $region93: #{helmholtz_loss_pde_fd.1} parent=5 // pred_region
        %s1811 = ssub.s32 %s15, 2
        // Predicated region
        $region95: #{helmholtz_loss_pde_fd.1} parent=93 // pred_check
          %p1812 = pneg %p196
        $region96: #{helmholtz_loss_pde_fd.1} parent=93 // pred_check_branch
          %1814 = sbr.rel (%p1812) target = $region98
        $region97: #{helmholtz_loss_pde_fd.1} parent=93 // pred_region
          %p1815 = scmp.lt.s32.totalorder %s21, 1
          %s1816 = scalar_select %p1815, %s21, 1
          %s1817 = smul.addr %s1816, 8
          %s1818 = scalar_lea.vmem %s8, %s1817
        $region98: #{helmholtz_loss_pde_fd.1} parent=93 // pred_fallthru
          _
      $region94: #{helmholtz_loss_pde_fd.1} parent=5 // pred_fallthru
        _
    $region6: #{helmholtz_loss_pde_fd.1} parent=1 // loop_footer
      %s19 = sadd.s32 1, %s15
    $region7: #{helmholtz_loss_pde_fd.1} parent=1 // loop_footer_branch
      %14 = sbr.rel target = $region3
    $region8: #{helmholtz_loss_pde_fd.1} parent=1 // loop_exit
      _

</llo_original>
